<compile_context>
chip_gen: v7x
topology: tpu7x:2x2x1
jax: 0.10.0
libtpu: 0.0.40
codegen_flags: <defaults>
</compile_context>

<pallas_src>
import jax
import jax.numpy as jnp
from jax.experimental import pallas as pl
from jax.experimental.pallas import tpu as pltpu


def _round_up(x, m):
    return (x + m - 1) // m * m


def tagger_decoder_kernel(x_ref, w_ref, b_ref, out_ref):
    """One sequence tile: folded matmul + bias + LogSoftmax over the batch axis.

    x_ref  : (B, TS, E)      f32  embedded tokens, batch-major
    w_ref  : (E, O_pad)      f32  folded W1@W2@Wo, lane-padded (resident)
    b_ref  : (1, O_pad)      f32  folded bias, lane-padded (resident)
    out_ref: (B, TS, O_pad)  f32  log-probabilities (softmax over the B axis)
    """
    w = w_ref[...]
    bias = b_ref[...]                      # (1, O_pad) broadcasts over TS rows
    nb = x_ref.shape[0]

    # Pass 1: per-batch flattened (TS, E) @ (E, O_pad) matmuls. Stash the raw
    # logits in out_ref (plain VMEM until the pipeline writes it back) and keep
    # a running elementwise max across the batch slabs.
    m = None
    for b in range(nb):
        logits_b = jnp.dot(x_ref[b], w, preferred_element_type=jnp.float32) + bias
        out_ref[b] = logits_b
        m = logits_b if m is None else jnp.maximum(m, logits_b)

    # Pass 2: sum of exp across the batch axis (VPU/EUP only, no relayouts).
    s = jnp.zeros_like(m)
    for b in range(nb):
        s = s + jnp.exp(out_ref[b] - m)
    norm = m + jnp.log(s)

    # Pass 3: normalize -> log-softmax over the batch axis; lane-dense stores.
    for b in range(nb):
        out_ref[b] = out_ref[b] - norm


def fold_decoder_params(params, lane_multiple=128):
    """Fold hidden_layer1 -> hidden_layer2 -> final_out (no nonlinearities) into one
    lane-padded matmul. Do this once at init, not per forward call."""
    w_eff = params["w1"] @ params["w2"] @ params["wo"]                                   # (E, O)
    b_eff = (params["b1"] @ params["w2"] + params["b2"]) @ params["wo"] + params["bo"]   # (1, O)
    e, o = w_eff.shape
    o_pad = _round_up(o, lane_multiple)
    w_pad = jnp.zeros((e, o_pad), jnp.float32).at[:, :o].set(w_eff.astype(jnp.float32))
    b_pad = jnp.zeros((1, o_pad), jnp.float32).at[:, :o].set(b_eff.astype(jnp.float32))
    return {"w_eff": w_pad, "b_eff": b_pad, "out_dim": o}


def tagger_forward(src, src_len, params, folded=None, *, seq_tile=None):
    """Full Tagger forward. Embedding gather is JAX glue; decoder + log-softmax in-kernel."""
    del src_len  # unused when repr_layer == 'embedding'
    if folded is None:
        folded = fold_decoder_params(params)

    # Encoder: embedding lookup (+ dropout p=0 == identity), gathered batch-major
    # so the kernel sees (B, S, E) with the softmax axis as the leading dim.
    emb = params["embedding"][src.T].astype(jnp.float32)          # (B, S, E)
    nb, ns, ne = emb.shape
    w_eff, b_eff = folded["w_eff"], folded["b_eff"]
    o_pad = w_eff.shape[1]
    o = folded["out_dim"]

    if seq_tile is None:
        seq_tile = ns if ns <= 256 else 256
    assert ns % seq_tile == 0, "seq_tile must divide the sequence length"
    assert seq_tile == ns or seq_tile % 8 == 0, "seq_tile must be a multiple of 8"
    grid = (ns // seq_tile,)

    cost = pl.CostEstimate(
        flops=int(2 * nb * ns * ne * o_pad + 5 * nb * ns * o_pad),
        transcendentals=int(nb * ns * o_pad + ns * o_pad),
        bytes_accessed=int(4 * (nb * ns * ne + nb * ns * o_pad + ne * o_pad + o_pad)),
    )

    out = pl.pallas_call(
        tagger_decoder_kernel,
        out_shape=jax.ShapeDtypeStruct((nb, ns, o_pad), jnp.float32),
        grid_spec=pltpu.PrefetchScalarGridSpec(
            num_scalar_prefetch=0,
            grid=grid,
            in_specs=[
                pl.BlockSpec((nb, seq_tile, ne), lambda i: (0, i, 0)),   # activations, tiled over S
                pl.BlockSpec((ne, o_pad), lambda i: (0, 0)),             # folded weights, resident
                pl.BlockSpec((1, o_pad), lambda i: (0, 0)),              # folded bias, resident
            ],
            out_specs=pl.BlockSpec((nb, seq_tile, o_pad), lambda i: (0, i, 0)),
        ),
        compiler_params=pltpu.CompilerParams(
            dimension_semantics=("parallel",),          # S-tiles are independent -> megacore on v7x
            vmem_limit_bytes=32 * 1024 * 1024,
        ),
        cost_estimate=cost,
    )(emb, w_eff, b_eff)

    # (B, S, O_pad) -> (S, B, O): transpose + strip lane padding (fused copy in XLA).
    return jnp.transpose(out, (1, 0, 2))[:, :, :o]


def tagger_forward_ref(src, src_len, params):
    """Pure-JAX reference, mirrors the PyTorch forward exactly (layer by layer)."""
    del src_len
    x = params["embedding"][src].astype(jnp.float32)
    x = x @ params["w1"] + params["b1"][0]
    x = x @ params["w2"] + params["b2"][0]
    x = x @ params["wo"] + params["bo"][0]
    return jax.nn.log_softmax(x, axis=1)


def init_params(key, input_dim, emb_dim, dec_hid_dim, output_dim, pad_idx):
    ks = jax.random.split(key, 7)
    emb = 0.1 * jax.random.normal(ks[0], (input_dim, emb_dim), jnp.float32)
    emb = emb.at[pad_idx].set(0.0)  # padding_idx row is zeroed, as in nn.Embedding
    # nn.Linear weights are (out, in); store pre-transposed as (in, out).
    w1 = 0.1 * jax.random.normal(ks[1], (emb_dim, dec_hid_dim), jnp.float32)
    b1 = 0.1 * jax.random.normal(ks[2], (1, dec_hid_dim), jnp.float32)
    w2 = 0.1 * jax.random.normal(ks[3], (dec_hid_dim, dec_hid_dim), jnp.float32)
    b2 = 0.1 * jax.random.normal(ks[4], (1, dec_hid_dim), jnp.float32)
    wo = 0.1 * jax.random.normal(ks[5], (dec_hid_dim, output_dim), jnp.float32)
    bo = 0.1 * jax.random.normal(ks[6], (1, output_dim), jnp.float32)
    return {"embedding": emb, "w1": w1, "b1": b1, "w2": w2, "b2": b2, "wo": wo, "bo": bo}


if __name__ == "__main__":
    # Small, module-consistent shapes; S large enough to exercise the sequence grid.
    S, B = 128, 8            # seq-first (S, B) token grid
    input_dim = 64           # vocab size
    emb_dim = 32
    dec_hid_dim = 64
    output_dim = 16
    pad_idx = 0
    seq_tile = 32            # grid of 4 sequence tiles -> double-buffered pipeline

    key = jax.random.PRNGKey(0)
    k_tok, k_par = jax.random.split(key)
    src = jax.random.randint(k_tok, (S, B), minval=1, maxval=input_dim, dtype=jnp.int32)
    src_len = jnp.full((B,), S, dtype=jnp.int32)
    params = init_params(k_par, input_dim, emb_dim, dec_hid_dim, output_dim, pad_idx)

    # Fold the decoder once (init-time cost, not on the forward path).
    folded = fold_decoder_params(params)

    out = tagger_forward(src, src_len, params, folded, seq_tile=seq_tile)
    out = jax.block_until_ready(out)

    ref = tagger_forward_ref(src, src_len, params)
    assert out.shape == (S, B, output_dim)
    assert jnp.allclose(out, ref, atol=1e-4, rtol=1e-4), "mismatch vs JAX reference"

    print("KERNEL_OK")
</pallas_src>

<mosaic_0001>
module attributes {stable_mosaic.version = 11 : i64} {
  func.func @tagger_decoder_kernel(%arg0: i32, %arg1: memref<8x32x32xf32, #tpu.memory_space<vmem>>, %arg2: memref<32x128xf32, #tpu.memory_space<vmem>>, %arg3: memref<1x128xf32, #tpu.memory_space<vmem>>, %arg4: memref<8x32x128xf32, #tpu.memory_space<vmem>>) attributes {dimension_semantics = [#tpu.dimension_semantics<parallel>], iteration_bounds = array<i64: 4>, scalar_prefetch = 0 : i64, scratch_operands = 0 : i64, tpu.core_type = #tpu.core_type<tc>, window_params = [{transform_indices = @transform_0, window_bounds = array<i64: 8, 32, 32>}, {pipeline_mode = #tpu.pipeline_mode<synchronous>, transform_indices = @transform_1, window_bounds = array<i64: 32, 128>}, {pipeline_mode = #tpu.pipeline_mode<synchronous>, transform_indices = @transform_2, window_bounds = array<i64: 1, 128>}, {transform_indices = @transform_3, window_bounds = array<i64: 8, 32, 128>}]} {
    %c0 = arith.constant 0 : index
    %c0_0 = arith.constant 0 : index
    %0 = vector.load %arg2[%c0, %c0_0] : memref<32x128xf32, #tpu.memory_space<vmem>>, vector<32x128xf32>
    %c0_1 = arith.constant 0 : index
    %c0_2 = arith.constant 0 : index
    %1 = vector.load %arg3[%c0_1, %c0_2] : memref<1x128xf32, #tpu.memory_space<vmem>>, vector<1x128xf32>
    %c0_3 = arith.constant 0 : index
    %c0_4 = arith.constant 0 : index
    %c0_5 = arith.constant 0 : index
    %2 = vector.load %arg1[%c0_3, %c0_4, %c0_5] : memref<8x32x32xf32, #tpu.memory_space<vmem>>, vector<1x32x32xf32>
    %3 = vector.shape_cast %2 : vector<1x32x32xf32> to vector<32x32xf32>
    %cst = arith.constant dense<0.000000e+00> : vector<32x128xf32>
    %4 = tpu.matmul %3, %0, %cst {dimension_numbers = #tpu.dot_dimension_numbers<[1], [0], [0], [1], [0, 0, 1, 1], [], []>} : vector<32x32xf32>, vector<32x128xf32>, vector<32x128xf32> -> vector<32x128xf32>
    %5 = vector.broadcast %1 : vector<1x128xf32> to vector<32x128xf32>
    %6 = arith.addf %4, %5 : vector<32x128xf32>
    %c0_6 = arith.constant 0 : index
    %c0_7 = arith.constant 0 : index
    %c0_8 = arith.constant 0 : index
    %7 = vector.load %arg4[%c0_6, %c0_7, %c0_8] : memref<8x32x128xf32, #tpu.memory_space<vmem>>, vector<1x32x128xf32>
    %8 = vector.shape_cast %7 : vector<1x32x128xf32> to vector<32x128xf32>
    %9 = vector.shape_cast %6 : vector<32x128xf32> to vector<1x32x128xf32>
    tpu.vector_store %arg4[%c0_6, %c0_7, %c0_8], %9 {strides = array<i32>} : memref<8x32x128xf32, #tpu.memory_space<vmem>>, vector<1x32x128xf32>,
    %c1 = arith.constant 1 : index
    %c0_9 = arith.constant 0 : index
    %c0_10 = arith.constant 0 : index
    %10 = vector.load %arg1[%c1, %c0_9, %c0_10] : memref<8x32x32xf32, #tpu.memory_space<vmem>>, vector<1x32x32xf32>
    %11 = vector.shape_cast %10 : vector<1x32x32xf32> to vector<32x32xf32>
    %cst_11 = arith.constant dense<0.000000e+00> : vector<32x128xf32>
    %12 = tpu.matmul %11, %0, %cst_11 {dimension_numbers = #tpu.dot_dimension_numbers<[1], [0], [0], [1], [0, 0, 1, 1], [], []>} : vector<32x32xf32>, vector<32x128xf32>, vector<32x128xf32> -> vector<32x128xf32>
    %13 = vector.broadcast %1 : vector<1x128xf32> to vector<32x128xf32>
    %14 = arith.addf %12, %13 : vector<32x128xf32>
    %c1_12 = arith.constant 1 : index
    %c0_13 = arith.constant 0 : index
    %c0_14 = arith.constant 0 : index
    %15 = vector.load %arg4[%c1_12, %c0_13, %c0_14] : memref<8x32x128xf32, #tpu.memory_space<vmem>>, vector<1x32x128xf32>
    %16 = vector.shape_cast %15 : vector<1x32x128xf32> to vector<32x128xf32>
    %17 = vector.shape_cast %14 : vector<32x128xf32> to vector<1x32x128xf32>
    tpu.vector_store %arg4[%c1_12, %c0_13, %c0_14], %17 {strides = array<i32>} : memref<8x32x128xf32, #tpu.memory_space<vmem>>, vector<1x32x128xf32>,
    %18 = arith.maximumf %6, %14 : vector<32x128xf32>
    %c2 = arith.constant 2 : index
    %c0_15 = arith.constant 0 : index
    %c0_16 = arith.constant 0 : index
    %19 = vector.load %arg1[%c2, %c0_15, %c0_16] : memref<8x32x32xf32, #tpu.memory_space<vmem>>, vector<1x32x32xf32>
    %20 = vector.shape_cast %19 : vector<1x32x32xf32> to vector<32x32xf32>
    %cst_17 = arith.constant dense<0.000000e+00> : vector<32x128xf32>
    %21 = tpu.matmul %20, %0, %cst_17 {dimension_numbers = #tpu.dot_dimension_numbers<[1], [0], [0], [1], [0, 0, 1, 1], [], []>} : vector<32x32xf32>, vector<32x128xf32>, vector<32x128xf32> -> vector<32x128xf32>
    %22 = vector.broadcast %1 : vector<1x128xf32> to vector<32x128xf32>
    %23 = arith.addf %21, %22 : vector<32x128xf32>
    %c2_18 = arith.constant 2 : index
    %c0_19 = arith.constant 0 : index
    %c0_20 = arith.constant 0 : index
    %24 = vector.load %arg4[%c2_18, %c0_19, %c0_20] : memref<8x32x128xf32, #tpu.memory_space<vmem>>, vector<1x32x128xf32>
    %25 = vector.shape_cast %24 : vector<1x32x128xf32> to vector<32x128xf32>
    %26 = vector.shape_cast %23 : vector<32x128xf32> to vector<1x32x128xf32>
    tpu.vector_store %arg4[%c2_18, %c0_19, %c0_20], %26 {strides = array<i32>} : memref<8x32x128xf32, #tpu.memory_space<vmem>>, vector<1x32x128xf32>,
    %27 = arith.maximumf %18, %23 : vector<32x128xf32>
    %c3 = arith.constant 3 : index
    %c0_21 = arith.constant 0 : index
    %c0_22 = arith.constant 0 : index
    %28 = vector.load %arg1[%c3, %c0_21, %c0_22] : memref<8x32x32xf32, #tpu.memory_space<vmem>>, vector<1x32x32xf32>
    %29 = vector.shape_cast %28 : vector<1x32x32xf32> to vector<32x32xf32>
    %cst_23 = arith.constant dense<0.000000e+00> : vector<32x128xf32>
    %30 = tpu.matmul %29, %0, %cst_23 {dimension_numbers = #tpu.dot_dimension_numbers<[1], [0], [0], [1], [0, 0, 1, 1], [], []>} : vector<32x32xf32>, vector<32x128xf32>, vector<32x128xf32> -> vector<32x128xf32>
    %31 = vector.broadcast %1 : vector<1x128xf32> to vector<32x128xf32>
    %32 = arith.addf %30, %31 : vector<32x128xf32>
    %c3_24 = arith.constant 3 : index
    %c0_25 = arith.constant 0 : index
    %c0_26 = arith.constant 0 : index
    %33 = vector.load %arg4[%c3_24, %c0_25, %c0_26] : memref<8x32x128xf32, #tpu.memory_space<vmem>>, vector<1x32x128xf32>
    %34 = vector.shape_cast %33 : vector<1x32x128xf32> to vector<32x128xf32>
    %35 = vector.shape_cast %32 : vector<32x128xf32> to vector<1x32x128xf32>
    tpu.vector_store %arg4[%c3_24, %c0_25, %c0_26], %35 {strides = array<i32>} : memref<8x32x128xf32, #tpu.memory_space<vmem>>, vector<1x32x128xf32>,
    %36 = arith.maximumf %27, %32 : vector<32x128xf32>
    %c4 = arith.constant 4 : index
    %c0_27 = arith.constant 0 : index
    %c0_28 = arith.constant 0 : index
    %37 = vector.load %arg1[%c4, %c0_27, %c0_28] : memref<8x32x32xf32, #tpu.memory_space<vmem>>, vector<1x32x32xf32>
    %38 = vector.shape_cast %37 : vector<1x32x32xf32> to vector<32x32xf32>
    %cst_29 = arith.constant dense<0.000000e+00> : vector<32x128xf32>
    %39 = tpu.matmul %38, %0, %cst_29 {dimension_numbers = #tpu.dot_dimension_numbers<[1], [0], [0], [1], [0, 0, 1, 1], [], []>} : vector<32x32xf32>, vector<32x128xf32>, vector<32x128xf32> -> vector<32x128xf32>
    %40 = vector.broadcast %1 : vector<1x128xf32> to vector<32x128xf32>
    %41 = arith.addf %39, %40 : vector<32x128xf32>
    %c4_30 = arith.constant 4 : index
    %c0_31 = arith.constant 0 : index
    %c0_32 = arith.constant 0 : index
    %42 = vector.load %arg4[%c4_30, %c0_31, %c0_32] : memref<8x32x128xf32, #tpu.memory_space<vmem>>, vector<1x32x128xf32>
    %43 = vector.shape_cast %42 : vector<1x32x128xf32> to vector<32x128xf32>
    %44 = vector.shape_cast %41 : vector<32x128xf32> to vector<1x32x128xf32>
    tpu.vector_store %arg4[%c4_30, %c0_31, %c0_32], %44 {strides = array<i32>} : memref<8x32x128xf32, #tpu.memory_space<vmem>>, vector<1x32x128xf32>,
    %45 = arith.maximumf %36, %41 : vector<32x128xf32>
    %c5 = arith.constant 5 : index
    %c0_33 = arith.constant 0 : index
    %c0_34 = arith.constant 0 : index
    %46 = vector.load %arg1[%c5, %c0_33, %c0_34] : memref<8x32x32xf32, #tpu.memory_space<vmem>>, vector<1x32x32xf32>
    %47 = vector.shape_cast %46 : vector<1x32x32xf32> to vector<32x32xf32>
    %cst_35 = arith.constant dense<0.000000e+00> : vector<32x128xf32>
    %48 = tpu.matmul %47, %0, %cst_35 {dimension_numbers = #tpu.dot_dimension_numbers<[1], [0], [0], [1], [0, 0, 1, 1], [], []>} : vector<32x32xf32>, vector<32x128xf32>, vector<32x128xf32> -> vector<32x128xf32>
    %49 = vector.broadcast %1 : vector<1x128xf32> to vector<32x128xf32>
    %50 = arith.addf %48, %49 : vector<32x128xf32>
    %c5_36 = arith.constant 5 : index
    %c0_37 = arith.constant 0 : index
    %c0_38 = arith.constant 0 : index
    %51 = vector.load %arg4[%c5_36, %c0_37, %c0_38] : memref<8x32x128xf32, #tpu.memory_space<vmem>>, vector<1x32x128xf32>
    %52 = vector.shape_cast %51 : vector<1x32x128xf32> to vector<32x128xf32>
    %53 = vector.shape_cast %50 : vector<32x128xf32> to vector<1x32x128xf32>
    tpu.vector_store %arg4[%c5_36, %c0_37, %c0_38], %53 {strides = array<i32>} : memref<8x32x128xf32, #tpu.memory_space<vmem>>, vector<1x32x128xf32>,
    %54 = arith.maximumf %45, %50 : vector<32x128xf32>
    %c6 = arith.constant 6 : index
    %c0_39 = arith.constant 0 : index
    %c0_40 = arith.constant 0 : index
    %55 = vector.load %arg1[%c6, %c0_39, %c0_40] : memref<8x32x32xf32, #tpu.memory_space<vmem>>, vector<1x32x32xf32>
    %56 = vector.shape_cast %55 : vector<1x32x32xf32> to vector<32x32xf32>
    %cst_41 = arith.constant dense<0.000000e+00> : vector<32x128xf32>
    %57 = tpu.matmul %56, %0, %cst_41 {dimension_numbers = #tpu.dot_dimension_numbers<[1], [0], [0], [1], [0, 0, 1, 1], [], []>} : vector<32x32xf32>, vector<32x128xf32>, vector<32x128xf32> -> vector<32x128xf32>
    %58 = vector.broadcast %1 : vector<1x128xf32> to vector<32x128xf32>
    %59 = arith.addf %57, %58 : vector<32x128xf32>
    %c6_42 = arith.constant 6 : index
    %c0_43 = arith.constant 0 : index
    %c0_44 = arith.constant 0 : index
    %60 = vector.load %arg4[%c6_42, %c0_43, %c0_44] : memref<8x32x128xf32, #tpu.memory_space<vmem>>, vector<1x32x128xf32>
    %61 = vector.shape_cast %60 : vector<1x32x128xf32> to vector<32x128xf32>
    %62 = vector.shape_cast %59 : vector<32x128xf32> to vector<1x32x128xf32>
    tpu.vector_store %arg4[%c6_42, %c0_43, %c0_44], %62 {strides = array<i32>} : memref<8x32x128xf32, #tpu.memory_space<vmem>>, vector<1x32x128xf32>,
    %63 = arith.maximumf %54, %59 : vector<32x128xf32>
    %c7 = arith.constant 7 : index
    %c0_45 = arith.constant 0 : index
    %c0_46 = arith.constant 0 : index
    %64 = vector.load %arg1[%c7, %c0_45, %c0_46] : memref<8x32x32xf32, #tpu.memory_space<vmem>>, vector<1x32x32xf32>
    %65 = vector.shape_cast %64 : vector<1x32x32xf32> to vector<32x32xf32>
    %cst_47 = arith.constant dense<0.000000e+00> : vector<32x128xf32>
    %66 = tpu.matmul %65, %0, %cst_47 {dimension_numbers = #tpu.dot_dimension_numbers<[1], [0], [0], [1], [0, 0, 1, 1], [], []>} : vector<32x32xf32>, vector<32x128xf32>, vector<32x128xf32> -> vector<32x128xf32>
    %67 = vector.broadcast %1 : vector<1x128xf32> to vector<32x128xf32>
    %68 = arith.addf %66, %67 : vector<32x128xf32>
    %c7_48 = arith.constant 7 : index
    %c0_49 = arith.constant 0 : index
    %c0_50 = arith.constant 0 : index
    %69 = vector.load %arg4[%c7_48, %c0_49, %c0_50] : memref<8x32x128xf32, #tpu.memory_space<vmem>>, vector<1x32x128xf32>
    %70 = vector.shape_cast %69 : vector<1x32x128xf32> to vector<32x128xf32>
    %71 = vector.shape_cast %68 : vector<32x128xf32> to vector<1x32x128xf32>
    tpu.vector_store %arg4[%c7_48, %c0_49, %c0_50], %71 {strides = array<i32>} : memref<8x32x128xf32, #tpu.memory_space<vmem>>, vector<1x32x128xf32>,
    %72 = arith.maximumf %63, %68 : vector<32x128xf32>
    %cst_51 = arith.constant 0.000000e+00 : f32
    %73 = vector.broadcast %cst_51 : f32 to vector<32x128xf32>
    %c0_52 = arith.constant 0 : index
    %c0_53 = arith.constant 0 : index
    %c0_54 = arith.constant 0 : index
    %74 = vector.load %arg4[%c0_52, %c0_53, %c0_54] : memref<8x32x128xf32, #tpu.memory_space<vmem>>, vector<1x32x128xf32>
    %75 = vector.shape_cast %74 : vector<1x32x128xf32> to vector<32x128xf32>
    %76 = arith.subf %75, %72 : vector<32x128xf32>
    %77 = math.exp %76 : vector<32x128xf32>
    %78 = arith.addf %73, %77 : vector<32x128xf32>
    %c1_55 = arith.constant 1 : index
    %c0_56 = arith.constant 0 : index
    %c0_57 = arith.constant 0 : index
    %79 = vector.load %arg4[%c1_55, %c0_56, %c0_57] : memref<8x32x128xf32, #tpu.memory_space<vmem>>, vector<1x32x128xf32>
    %80 = vector.shape_cast %79 : vector<1x32x128xf32> to vector<32x128xf32>
    %81 = arith.subf %80, %72 : vector<32x128xf32>
    %82 = math.exp %81 : vector<32x128xf32>
    %83 = arith.addf %78, %82 : vector<32x128xf32>
    %c2_58 = arith.constant 2 : index
    %c0_59 = arith.constant 0 : index
    %c0_60 = arith.constant 0 : index
    %84 = vector.load %arg4[%c2_58, %c0_59, %c0_60] : memref<8x32x128xf32, #tpu.memory_space<vmem>>, vector<1x32x128xf32>
    %85 = vector.shape_cast %84 : vector<1x32x128xf32> to vector<32x128xf32>
    %86 = arith.subf %85, %72 : vector<32x128xf32>
    %87 = math.exp %86 : vector<32x128xf32>
    %88 = arith.addf %83, %87 : vector<32x128xf32>
    %c3_61 = arith.constant 3 : index
    %c0_62 = arith.constant 0 : index
    %c0_63 = arith.constant 0 : index
    %89 = vector.load %arg4[%c3_61, %c0_62, %c0_63] : memref<8x32x128xf32, #tpu.memory_space<vmem>>, vector<1x32x128xf32>
    %90 = vector.shape_cast %89 : vector<1x32x128xf32> to vector<32x128xf32>
    %91 = arith.subf %90, %72 : vector<32x128xf32>
    %92 = math.exp %91 : vector<32x128xf32>
    %93 = arith.addf %88, %92 : vector<32x128xf32>
    %c4_64 = arith.constant 4 : index
    %c0_65 = arith.constant 0 : index
    %c0_66 = arith.constant 0 : index
    %94 = vector.load %arg4[%c4_64, %c0_65, %c0_66] : memref<8x32x128xf32, #tpu.memory_space<vmem>>, vector<1x32x128xf32>
    %95 = vector.shape_cast %94 : vector<1x32x128xf32> to vector<32x128xf32>
    %96 = arith.subf %95, %72 : vector<32x128xf32>
    %97 = math.exp %96 : vector<32x128xf32>
    %98 = arith.addf %93, %97 : vector<32x128xf32>
    %c5_67 = arith.constant 5 : index
    %c0_68 = arith.constant 0 : index
    %c0_69 = arith.constant 0 : index
    %99 = vector.load %arg4[%c5_67, %c0_68, %c0_69] : memref<8x32x128xf32, #tpu.memory_space<vmem>>, vector<1x32x128xf32>
    %100 = vector.shape_cast %99 : vector<1x32x128xf32> to vector<32x128xf32>
    %101 = arith.subf %100, %72 : vector<32x128xf32>
    %102 = math.exp %101 : vector<32x128xf32>
    %103 = arith.addf %98, %102 : vector<32x128xf32>
    %c6_70 = arith.constant 6 : index
    %c0_71 = arith.constant 0 : index
    %c0_72 = arith.constant 0 : index
    %104 = vector.load %arg4[%c6_70, %c0_71, %c0_72] : memref<8x32x128xf32, #tpu.memory_space<vmem>>, vector<1x32x128xf32>
    %105 = vector.shape_cast %104 : vector<1x32x128xf32> to vector<32x128xf32>
    %106 = arith.subf %105, %72 : vector<32x128xf32>
    %107 = math.exp %106 : vector<32x128xf32>
    %108 = arith.addf %103, %107 : vector<32x128xf32>
    %c7_73 = arith.constant 7 : index
    %c0_74 = arith.constant 0 : index
    %c0_75 = arith.constant 0 : index
    %109 = vector.load %arg4[%c7_73, %c0_74, %c0_75] : memref<8x32x128xf32, #tpu.memory_space<vmem>>, vector<1x32x128xf32>
    %110 = vector.shape_cast %109 : vector<1x32x128xf32> to vector<32x128xf32>
    %111 = arith.subf %110, %72 : vector<32x128xf32>
    %112 = math.exp %111 : vector<32x128xf32>
    %113 = arith.addf %108, %112 : vector<32x128xf32>
    %114 = math.log %113 : vector<32x128xf32>
    %115 = arith.addf %72, %114 : vector<32x128xf32>
    %c0_76 = arith.constant 0 : index
    %c0_77 = arith.constant 0 : index
    %c0_78 = arith.constant 0 : index
    %116 = vector.load %arg4[%c0_76, %c0_77, %c0_78] : memref<8x32x128xf32, #tpu.memory_space<vmem>>, vector<1x32x128xf32>
    %117 = vector.shape_cast %116 : vector<1x32x128xf32> to vector<32x128xf32>
    %118 = arith.subf %117, %115 : vector<32x128xf32>
    %c0_79 = arith.constant 0 : index
    %c0_80 = arith.constant 0 : index
    %c0_81 = arith.constant 0 : index
    %119 = vector.load %arg4[%c0_79, %c0_80, %c0_81] : memref<8x32x128xf32, #tpu.memory_space<vmem>>, vector<1x32x128xf32>
    %120 = vector.shape_cast %119 : vector<1x32x128xf32> to vector<32x128xf32>
    %121 = vector.shape_cast %118 : vector<32x128xf32> to vector<1x32x128xf32>
    tpu.vector_store %arg4[%c0_79, %c0_80, %c0_81], %121 {strides = array<i32>} : memref<8x32x128xf32, #tpu.memory_space<vmem>>, vector<1x32x128xf32>,
    %c1_82 = arith.constant 1 : index
    %c0_83 = arith.constant 0 : index
    %c0_84 = arith.constant 0 : index
    %122 = vector.load %arg4[%c1_82, %c0_83, %c0_84] : memref<8x32x128xf32, #tpu.memory_space<vmem>>, vector<1x32x128xf32>
    %123 = vector.shape_cast %122 : vector<1x32x128xf32> to vector<32x128xf32>
    %124 = arith.subf %123, %115 : vector<32x128xf32>
    %c1_85 = arith.constant 1 : index
    %c0_86 = arith.constant 0 : index
    %c0_87 = arith.constant 0 : index
    %125 = vector.load %arg4[%c1_85, %c0_86, %c0_87] : memref<8x32x128xf32, #tpu.memory_space<vmem>>, vector<1x32x128xf32>
    %126 = vector.shape_cast %125 : vector<1x32x128xf32> to vector<32x128xf32>
    %127 = vector.shape_cast %124 : vector<32x128xf32> to vector<1x32x128xf32>
    tpu.vector_store %arg4[%c1_85, %c0_86, %c0_87], %127 {strides = array<i32>} : memref<8x32x128xf32, #tpu.memory_space<vmem>>, vector<1x32x128xf32>,
    %c2_88 = arith.constant 2 : index
    %c0_89 = arith.constant 0 : index
    %c0_90 = arith.constant 0 : index
    %128 = vector.load %arg4[%c2_88, %c0_89, %c0_90] : memref<8x32x128xf32, #tpu.memory_space<vmem>>, vector<1x32x128xf32>
    %129 = vector.shape_cast %128 : vector<1x32x128xf32> to vector<32x128xf32>
    %130 = arith.subf %129, %115 : vector<32x128xf32>
    %c2_91 = arith.constant 2 : index
    %c0_92 = arith.constant 0 : index
    %c0_93 = arith.constant 0 : index
    %131 = vector.load %arg4[%c2_91, %c0_92, %c0_93] : memref<8x32x128xf32, #tpu.memory_space<vmem>>, vector<1x32x128xf32>
    %132 = vector.shape_cast %131 : vector<1x32x128xf32> to vector<32x128xf32>
    %133 = vector.shape_cast %130 : vector<32x128xf32> to vector<1x32x128xf32>
    tpu.vector_store %arg4[%c2_91, %c0_92, %c0_93], %133 {strides = array<i32>} : memref<8x32x128xf32, #tpu.memory_space<vmem>>, vector<1x32x128xf32>,
    %c3_94 = arith.constant 3 : index
    %c0_95 = arith.constant 0 : index
    %c0_96 = arith.constant 0 : index
    %134 = vector.load %arg4[%c3_94, %c0_95, %c0_96] : memref<8x32x128xf32, #tpu.memory_space<vmem>>, vector<1x32x128xf32>
    %135 = vector.shape_cast %134 : vector<1x32x128xf32> to vector<32x128xf32>
    %136 = arith.subf %135, %115 : vector<32x128xf32>
    %c3_97 = arith.constant 3 : index
    %c0_98 = arith.constant 0 : index
    %c0_99 = arith.constant 0 : index
    %137 = vector.load %arg4[%c3_97, %c0_98, %c0_99] : memref<8x32x128xf32, #tpu.memory_space<vmem>>, vector<1x32x128xf32>
    %138 = vector.shape_cast %137 : vector<1x32x128xf32> to vector<32x128xf32>
    %139 = vector.shape_cast %136 : vector<32x128xf32> to vector<1x32x128xf32>
    tpu.vector_store %arg4[%c3_97, %c0_98, %c0_99], %139 {strides = array<i32>} : memref<8x32x128xf32, #tpu.memory_space<vmem>>, vector<1x32x128xf32>,
    %c4_100 = arith.constant 4 : index
    %c0_101 = arith.constant 0 : index
    %c0_102 = arith.constant 0 : index
    %140 = vector.load %arg4[%c4_100, %c0_101, %c0_102] : memref<8x32x128xf32, #tpu.memory_space<vmem>>, vector<1x32x128xf32>
    %141 = vector.shape_cast %140 : vector<1x32x128xf32> to vector<32x128xf32>
    %142 = arith.subf %141, %115 : vector<32x128xf32>
    %c4_103 = arith.constant 4 : index
    %c0_104 = arith.constant 0 : index
    %c0_105 = arith.constant 0 : index
    %143 = vector.load %arg4[%c4_103, %c0_104, %c0_105] : memref<8x32x128xf32, #tpu.memory_space<vmem>>, vector<1x32x128xf32>
    %144 = vector.shape_cast %143 : vector<1x32x128xf32> to vector<32x128xf32>
    %145 = vector.shape_cast %142 : vector<32x128xf32> to vector<1x32x128xf32>
    tpu.vector_store %arg4[%c4_103, %c0_104, %c0_105], %145 {strides = array<i32>} : memref<8x32x128xf32, #tpu.memory_space<vmem>>, vector<1x32x128xf32>,
    %c5_106 = arith.constant 5 : index
    %c0_107 = arith.constant 0 : index
    %c0_108 = arith.constant 0 : index
    %146 = vector.load %arg4[%c5_106, %c0_107, %c0_108] : memref<8x32x128xf32, #tpu.memory_space<vmem>>, vector<1x32x128xf32>
    %147 = vector.shape_cast %146 : vector<1x32x128xf32> to vector<32x128xf32>
    %148 = arith.subf %147, %115 : vector<32x128xf32>
    %c5_109 = arith.constant 5 : index
    %c0_110 = arith.constant 0 : index
    %c0_111 = arith.constant 0 : index
    %149 = vector.load %arg4[%c5_109, %c0_110, %c0_111] : memref<8x32x128xf32, #tpu.memory_space<vmem>>, vector<1x32x128xf32>
    %150 = vector.shape_cast %149 : vector<1x32x128xf32> to vector<32x128xf32>
    %151 = vector.shape_cast %148 : vector<32x128xf32> to vector<1x32x128xf32>
    tpu.vector_store %arg4[%c5_109, %c0_110, %c0_111], %151 {strides = array<i32>} : memref<8x32x128xf32, #tpu.memory_space<vmem>>, vector<1x32x128xf32>,
    %c6_112 = arith.constant 6 : index
    %c0_113 = arith.constant 0 : index
    %c0_114 = arith.constant 0 : index
    %152 = vector.load %arg4[%c6_112, %c0_113, %c0_114] : memref<8x32x128xf32, #tpu.memory_space<vmem>>, vector<1x32x128xf32>
    %153 = vector.shape_cast %152 : vector<1x32x128xf32> to vector<32x128xf32>
    %154 = arith.subf %153, %115 : vector<32x128xf32>
    %c6_115 = arith.constant 6 : index
    %c0_116 = arith.constant 0 : index
    %c0_117 = arith.constant 0 : index
    %155 = vector.load %arg4[%c6_115, %c0_116, %c0_117] : memref<8x32x128xf32, #tpu.memory_space<vmem>>, vector<1x32x128xf32>
    %156 = vector.shape_cast %155 : vector<1x32x128xf32> to vector<32x128xf32>
    %157 = vector.shape_cast %154 : vector<32x128xf32> to vector<1x32x128xf32>
    tpu.vector_store %arg4[%c6_115, %c0_116, %c0_117], %157 {strides = array<i32>} : memref<8x32x128xf32, #tpu.memory_space<vmem>>, vector<1x32x128xf32>,
    %c7_118 = arith.constant 7 : index
    %c0_119 = arith.constant 0 : index
    %c0_120 = arith.constant 0 : index
    %158 = vector.load %arg4[%c7_118, %c0_119, %c0_120] : memref<8x32x128xf32, #tpu.memory_space<vmem>>, vector<1x32x128xf32>
    %159 = vector.shape_cast %158 : vector<1x32x128xf32> to vector<32x128xf32>
    %160 = arith.subf %159, %115 : vector<32x128xf32>
    %c7_121 = arith.constant 7 : index
    %c0_122 = arith.constant 0 : index
    %c0_123 = arith.constant 0 : index
    %161 = vector.load %arg4[%c7_121, %c0_122, %c0_123] : memref<8x32x128xf32, #tpu.memory_space<vmem>>, vector<1x32x128xf32>
    %162 = vector.shape_cast %161 : vector<1x32x128xf32> to vector<32x128xf32>
    %163 = vector.shape_cast %160 : vector<32x128xf32> to vector<1x32x128xf32>
    tpu.vector_store %arg4[%c7_121, %c0_122, %c0_123], %163 {strides = array<i32>} : memref<8x32x128xf32, #tpu.memory_space<vmem>>, vector<1x32x128xf32>,
    return
  }
  func.func @transform_0(%arg0: i32) -> (i32, i32, i32) {
    %c0_i32 = arith.constant 0 : i32
    %c0_i32_0 = arith.constant 0 : i32
    %c0_i32_1 = arith.constant 0 : i32
    return %c0_i32, %arg0, %c0_i32_0 : i32, i32, i32
  }
  func.func @transform_1(%arg0: i32) -> (i32, i32) {
    %c0_i32 = arith.constant 0 : i32
    %c0_i32_0 = arith.constant 0 : i32
    %c0_i32_1 = arith.constant 0 : i32
    return %c0_i32, %c0_i32_0 : i32, i32
  }
  func.func @transform_2(%arg0: i32) -> (i32, i32) {
    %c0_i32 = arith.constant 0 : i32
    %c0_i32_0 = arith.constant 0 : i32
    %c0_i32_1 = arith.constant 0 : i32
    return %c0_i32, %c0_i32_0 : i32, i32
  }
  func.func @transform_3(%arg0: i32) -> (i32, i32, i32) {
    %c0_i32 = arith.constant 0 : i32
    %c0_i32_0 = arith.constant 0 : i32
    %c0_i32_1 = arith.constant 0 : i32
    return %c0_i32, %arg0, %c0_i32_0 : i32, i32, i32
  }
}

</mosaic_0001>

<llo_original>
// kernel: tpu_custom_call.1
$region0: #{tpu_custom_call.1}
  #allocation0 [shape = 'u32[]', space=smem, size = 0x4, offset = 0x4, fixed_abs, tag = 'smem constant byte address 0x4 - core index']
  #allocation1 [shape = 'u32[144,128]{1,0:T(1,128)}', space=vmem, size = 0x12000, scoped, tag = 'internal scratch']
  #allocation5 [shape = 's32[]', space=sflag, size = 0x4, offset = 0, fixed_abs, tag = 'sflag constant byte address 0x0 - dummy sync flag']
  %s0 = inlined_call_operand.vmem [shape: f32[8,128,32], index: 0, kind: input, shape index: {}]
  %s1 = inlined_call_operand.vmem [shape: f32[32,128], index: 1, kind: input, shape index: {}]
  %s2 = inlined_call_operand.vmem [shape: f32[1,128], index: 2, kind: input, shape index: {}]
  %s3 = inlined_call_operand.hbm [shape: f32[8,128,128], index: 3, kind: output, shape index: {}]
  %s4 = sld [smem:[#allocation0]]
  $region83: #{tpu_custom_call.1} parent=0
    _
  %s6 = ssub.s32 1, %s4
  %s7 = scalar_select 0, %s6, %s4
  $region1: #{tpu_custom_call.1} parent=0
    #allocation2 [shape = 'u8[262144]{0}', space=vmem, size = 0x40000, scoped, tag = 'input window, operand 0']
    #allocation3 [shape = 'u8[262144]{0}', space=vmem, size = 0x40000, scoped, tag = 'output window, operand 0']
    #allocation4 [shape = 's32[2]{0}', space=sflag, size = 0x8, scoped, tag = 'scoped memory for tpu_custom_call.1']
    %8 = vsyncpa [#allocation4], 0
    %s9 = scalar_lea.sflag [#allocation4], 1
    %10 = vsyncpa %s9, 0
    loop: start=0, step=1, limit=6
    $region2: #{tpu_custom_call.1} parent=1 // loop_pre_header
      _
    $region3: #{tpu_custom_call.1} parent=1 // loop_header
      %s12 = sphi 0, %s16
      %p13 = scmp.ge.s32.totalorder %s12, 6
      %s22 = sphi 0, %s24
      %s25 = sphi 0, %s22
      %s26 = sphi 0, %s25
      %s42 = sphi 0, %s26
      %s46 = sphi 0, %s46
      %s48 = sphi 0, %s46
      %s49 = sphi 0, %s48
      %s63 = sphi 0, %s49
      %s67 = sphi 0, %s67
      %s69 = sphi 0, %s67
      %s70 = sphi 0, %s69
      %s84 = sphi 0, %s70
      %s90 = sphi 0, %s92
      %s93 = sphi 0, %s90
      %s94 = sphi 0, %s93
      %s110 = sphi 0, %s94
    $region4: #{tpu_custom_call.1} parent=1 // loop_header_branch
      %15 = sbr.rel (%p13) target = $region8
    $region5: #{tpu_custom_call.1} parent=1 // loop_body
      %s17 = ssub.s32 %s12, 1
      %s18 = ssub.s32 %s12, 2
      %s19 = sadd.s32 %s12, 1
      %s20 = ssub.s32 %s12, %s19
      %p21 = scmp.eq.s32.totalorder %s20, 0
      %s23 = sadd.s32 %s22, 1
      %s24 = scalar_select %p21, %s22, %s23
      %p27 = pneg %p21
      %p28 = scmp.eq.s32.totalorder %s12, 3
      %p29 = por %p27, %p28
      %p30 = scmp.ne.s32.totalorder %s22, %s25
      %p31 = scmp.eq.s32.totalorder %s12, 0
      %p32 = por %p30, %p31
      %p33 = scmp.ne.s32.totalorder %s22, %s25
      %p34 = scmp.eq.s32.totalorder %s17, 3
      %p35 = por %p33, %p34
      %p36 = scmp.ne.s32.totalorder %s25, %s26
      %p37 = scmp.eq.s32.totalorder %s17, 0
      %p38 = por %p36, %p37
      %p39 = scmp.ne.s32.totalorder %s25, %s26
      %p40 = scmp.eq.s32.totalorder %s18, 3
      %p41 = por %p39, %p40
      %p43 = scmp.ne.s32.totalorder %s26, %s42
      %p44 = scmp.eq.s32.totalorder %s18, 0
      %p45 = por %p43, %p44
      %s47 = sadd.s32 %s46, 1
      %p50 = scmp.eq.s32.totalorder %s12, 3
      %p51 = scmp.ne.s32.totalorder %s46, %s48
      %p52 = scmp.eq.s32.totalorder %s12, 0
      %p53 = por %p51, %p52
      %p54 = scmp.ne.s32.totalorder %s46, %s48
      %p55 = scmp.eq.s32.totalorder %s17, 3
      %p56 = por %p54, %p55
      %p57 = scmp.ne.s32.totalorder %s48, %s49
      %p58 = scmp.eq.s32.totalorder %s17, 0
      %p59 = por %p57, %p58
      %p60 = scmp.ne.s32.totalorder %s48, %s49
      %p61 = scmp.eq.s32.totalorder %s18, 3
      %p62 = por %p60, %p61
      %p64 = scmp.ne.s32.totalorder %s49, %s63
      %p65 = scmp.eq.s32.totalorder %s18, 0
      %p66 = por %p64, %p65
      %s68 = sadd.s32 %s67, 1
      %p71 = scmp.eq.s32.totalorder %s12, 3
      %p72 = scmp.ne.s32.totalorder %s67, %s69
      %p73 = scmp.eq.s32.totalorder %s12, 0
      %p74 = por %p72, %p73
      %p75 = scmp.ne.s32.totalorder %s67, %s69
      %p76 = scmp.eq.s32.totalorder %s17, 3
      %p77 = por %p75, %p76
      %p78 = scmp.ne.s32.totalorder %s69, %s70
      %p79 = scmp.eq.s32.totalorder %s17, 0
      %p80 = por %p78, %p79
      %p81 = scmp.ne.s32.totalorder %s69, %s70
      %p82 = scmp.eq.s32.totalorder %s18, 3
      %p83 = por %p81, %p82
      %p85 = scmp.ne.s32.totalorder %s70, %s84
      %p86 = scmp.eq.s32.totalorder %s18, 0
      %p87 = por %p85, %p86
      %s88 = ssub.s32 %s12, %s19
      %p89 = scmp.eq.s32.totalorder %s88, 0
      %s91 = sadd.s32 %s90, 1
      %s92 = scalar_select %p89, %s90, %s91
      %p95 = pneg %p89
      %p96 = scmp.eq.s32.totalorder %s12, 3
      %p97 = por %p95, %p96
      %p98 = scmp.ne.s32.totalorder %s90, %s93
      %p99 = scmp.eq.s32.totalorder %s12, 0
      %p100 = por %p98, %p99
      %p101 = scmp.ne.s32.totalorder %s90, %s93
      %p102 = scmp.eq.s32.totalorder %s17, 3
      %p103 = por %p101, %p102
      %p104 = scmp.ne.s32.totalorder %s93, %s94
      %p105 = scmp.eq.s32.totalorder %s17, 0
      %p106 = por %p104, %p105
      %p107 = scmp.ne.s32.totalorder %s93, %s94
      %p108 = scmp.eq.s32.totalorder %s18, 3
      %p109 = por %p107, %p108
      %p111 = scmp.ne.s32.totalorder %s94, %s110
      %p112 = scmp.eq.s32.totalorder %s18, 0
      %p113 = por %p111, %p112
      %p114 = scmp.le.s32.totalorder 1, %s12
      %p115 = scmp.lt.s32.totalorder %s12, 5
      %p116 = pnand %p114, %p115
      %p117 = pneg %p116
      // Predicated region
      $region9: #{tpu_custom_call.1} parent=5 // pred_check
        _
      $region10: #{tpu_custom_call.1} parent=5 // pred_check_branch
        %119 = sbr.rel (%p116) target = $region12
      $region11: #{tpu_custom_call.1} parent=5 // pred_region
        %s120 = ssub.s32 %s12, 1
        // Predicated region
        $region13: #{tpu_custom_call.1} parent=11 // pred_check
          %p121 = pneg %p59
        $region14: #{tpu_custom_call.1} parent=11 // pred_check_branch
          %123 = sbr.rel (%p121) target = $region16
        $region15: #{tpu_custom_call.1} parent=11 // pred_region
          _
        $region16: #{tpu_custom_call.1} parent=11 // pred_fallthru
          _
        // Predicated region
        $region17: #{tpu_custom_call.1} parent=11 // pred_check
          %p124 = pneg %p80
        $region18: #{tpu_custom_call.1} parent=11 // pred_check_branch
          %126 = sbr.rel (%p124) target = $region20
        $region19: #{tpu_custom_call.1} parent=11 // pred_region
          _
        $region20: #{tpu_custom_call.1} parent=11 // pred_fallthru
          _
      $region12: #{tpu_custom_call.1} parent=5 // pred_fallthru
        _
      %p127 = scmp.lt.s32.totalorder %s12, 4
      // Predicated region
      $region21: #{tpu_custom_call.1} parent=5 // pred_check
        %p128 = pneg %p127
      $region22: #{tpu_custom_call.1} parent=5 // pred_check_branch
        %130 = sbr.rel (%p128) target = $region24
      $region23: #{tpu_custom_call.1} parent=5 // pred_region
        // Predicated region
        $region25: #{tpu_custom_call.1} parent=23 // pred_check
          %p131 = pneg %p32
        $region26: #{tpu_custom_call.1} parent=23 // pred_check_branch
          %133 = sbr.rel (%p131) target = $region28
        $region27: #{tpu_custom_call.1} parent=23 // pred_region
          %s134 = sand.u32 %s22, 1
          %s135 = sand.u32 %s22, 1
          %s136 = smul.addr %s135, 256
          %s137 = scalar_lea.vmem [#allocation2], %s136
          %s138 = smul.u32 4, %s12
          %s139 = smul.addr %s138, 8
          %s140 = scalar_lea.vmem %s0, %s139
          // Predicated region
          $region29: #{tpu_custom_call.1} parent=27 // pred_check
            _
          $region30: #{tpu_custom_call.1} parent=27 // pred_check_branch
            %142 = sbr.rel (0) target = $region32
          $region31: #{tpu_custom_call.1} parent=27 // pred_region
            // Predicated region
            $region33: #{tpu_custom_call.1} parent=31 // pred_check
              _
            $region34: #{tpu_custom_call.1} parent=31 // pred_check_branch
              %144 = sbr.rel (0) target = $region36
            $region35: #{tpu_custom_call.1} parent=31 // pred_region
              // Predicated region
              $region48: #{tpu_custom_call.1} parent=35 // pred_check
                _
              $region49: #{tpu_custom_call.1} parent=35 // pred_check_branch
                %221 = sbr.rel (0) target = $region51
              $region50: #{tpu_custom_call.1} parent=35 // pred_region
                loop: start=0, step=1, limit=1
                $region52: #{tpu_custom_call.1} parent=50 // loop_pre_header
                  _
                $region53: #{tpu_custom_call.1} parent=50 // loop_header
                  %s223 = sphi 0, %s227
                  %p224 = scmp.ge.s32.totalorder %s223, 1
                  %s228 = sphi %s140, %s140
                  %s229 = sphi %s137, %s137
                $region54: #{tpu_custom_call.1} parent=50 // loop_header_branch
                  %226 = sbr.rel (%p224) target = $region58
                $region55: #{tpu_custom_call.1} parent=50 // loop_body
                  %v230 = vld [vmem:[%s228] sm:$0xff]
                  %231 = vst [vmem:[%s229] sm:$0xff] %v230
                  %v232 = vld [vmem:[%s228 + $0x8] sm:$0xff]
                  %233 = vst [vmem:[%s229 + $0x8] sm:$0xff] %v232
                  %v234 = vld [vmem:[%s228 + $0x10] sm:$0xff]
                  %235 = vst [vmem:[%s229 + $0x10] sm:$0xff] %v234
                  %v236 = vld [vmem:[%s228 + $0x18] sm:$0xff]
                  %237 = vst [vmem:[%s229 + $0x18] sm:$0xff] %v236
                  %v238 = vld [vmem:[%s228 + $0x80] sm:$0xff]
                  %239 = vst [vmem:[%s229 + $0x20] sm:$0xff] %v238
                  %v240 = vld [vmem:[%s228 + $0x88] sm:$0xff]
                  %241 = vst [vmem:[%s229 + $0x28] sm:$0xff] %v240
                  %v242 = vld [vmem:[%s228 + $0x90] sm:$0xff]
                  %243 = vst [vmem:[%s229 + $0x30] sm:$0xff] %v242
                  %v244 = vld [vmem:[%s228 + $0x98] sm:$0xff]
                  %245 = vst [vmem:[%s229 + $0x38] sm:$0xff] %v244
                  %v246 = vld [vmem:[%s228 + $0x100] sm:$0xff]
                  %247 = vst [vmem:[%s229 + $0x40] sm:$0xff] %v246
                  %v248 = vld [vmem:[%s228 + $0x108] sm:$0xff]
                  %249 = vst [vmem:[%s229 + $0x48] sm:$0xff] %v248
                  %v250 = vld [vmem:[%s228 + $0x110] sm:$0xff]
                  %251 = vst [vmem:[%s229 + $0x50] sm:$0xff] %v250
                  %v252 = vld [vmem:[%s228 + $0x118] sm:$0xff]
                  %253 = vst [vmem:[%s229 + $0x58] sm:$0xff] %v252
                  %v254 = vld [vmem:[%s228 + $0x180] sm:$0xff]
                  %255 = vst [vmem:[%s229 + $0x60] sm:$0xff] %v254
                  %v256 = vld [vmem:[%s228 + $0x188] sm:$0xff]
                  %257 = vst [vmem:[%s229 + $0x68] sm:$0xff] %v256
                  %v258 = vld [vmem:[%s228 + $0x190] sm:$0xff]
                  %259 = vst [vmem:[%s229 + $0x70] sm:$0xff] %v258
                  %v260 = vld [vmem:[%s228 + $0x198] sm:$0xff]
                  %261 = vst [vmem:[%s229 + $0x78] sm:$0xff] %v260
                  %v262 = vld [vmem:[%s228 + $0x200] sm:$0xff]
                  %263 = vst [vmem:[%s229 + $0x80] sm:$0xff] %v262
                  %v264 = vld [vmem:[%s228 + $0x208] sm:$0xff]
                  %265 = vst [vmem:[%s229 + $0x88] sm:$0xff] %v264
                  %v266 = vld [vmem:[%s228 + $0x210] sm:$0xff]
                  %267 = vst [vmem:[%s229 + $0x90] sm:$0xff] %v266
                  %v268 = vld [vmem:[%s228 + $0x218] sm:$0xff]
                  %269 = vst [vmem:[%s229 + $0x98] sm:$0xff] %v268
                  %v270 = vld [vmem:[%s228 + $0x280] sm:$0xff]
                  %271 = vst [vmem:[%s229 + $0xa0] sm:$0xff] %v270
                  %v272 = vld [vmem:[%s228 + $0x288] sm:$0xff]
                  %273 = vst [vmem:[%s229 + $0xa8] sm:$0xff] %v272
                  %v274 = vld [vmem:[%s228 + $0x290] sm:$0xff]
                  %275 = vst [vmem:[%s229 + $0xb0] sm:$0xff] %v274
                  %v276 = vld [vmem:[%s228 + $0x298] sm:$0xff]
                  %277 = vst [vmem:[%s229 + $0xb8] sm:$0xff] %v276
                  %v278 = vld [vmem:[%s228 + $0x300] sm:$0xff]
                  %279 = vst [vmem:[%s229 + $0xc0] sm:$0xff] %v278
                  %v280 = vld [vmem:[%s228 + $0x308] sm:$0xff]
                  %281 = vst [vmem:[%s229 + $0xc8] sm:$0xff] %v280
                  %v282 = vld [vmem:[%s228 + $0x310] sm:$0xff]
                  %283 = vst [vmem:[%s229 + $0xd0] sm:$0xff] %v282
                  %v284 = vld [vmem:[%s228 + $0x318] sm:$0xff]
                  %285 = vst [vmem:[%s229 + $0xd8] sm:$0xff] %v284
                  %v286 = vld [vmem:[%s228 + $0x380] sm:$0xff]
                  %287 = vst [vmem:[%s229 + $0xe0] sm:$0xff] %v286
                  %v288 = vld [vmem:[%s228 + $0x388] sm:$0xff]
                  %289 = vst [vmem:[%s229 + $0xe8] sm:$0xff] %v288
                  %v290 = vld [vmem:[%s228 + $0x390] sm:$0xff]
                  %291 = vst [vmem:[%s229 + $0xf0] sm:$0xff] %v290
                  %v292 = vld [vmem:[%s228 + $0x398] sm:$0xff]
                  %293 = vst [vmem:[%s229 + $0xf8] sm:$0xff] %v292
                $region56: #{tpu_custom_call.1} parent=50 // loop_footer
                  %s227 = sadd.s32 1, %s223
                $region57: #{tpu_custom_call.1} parent=50 // loop_footer_branch
                  %222 = sbr.rel target = $region53
                $region58: #{tpu_custom_call.1} parent=50 // loop_exit
                  _
              $region51: #{tpu_custom_call.1} parent=35 // pred_fallthru
                _
              // Predicated region
              $region59: #{tpu_custom_call.1} parent=35 // pred_check
                _
              $region60: #{tpu_custom_call.1} parent=35 // pred_check_branch
                %295 = sbr.rel target = $region62
              $region61: #{tpu_custom_call.1} parent=35 // pred_region
                _
              $region62: #{tpu_custom_call.1} parent=35 // pred_fallthru
                _
            $region36: #{tpu_custom_call.1} parent=31 // pred_fallthru
              _
            // Predicated region
            $region37: #{tpu_custom_call.1} parent=31 // pred_check
              _
            $region38: #{tpu_custom_call.1} parent=31 // pred_check_branch
              %146 = sbr.rel target = $region40
            $region39: #{tpu_custom_call.1} parent=31 // pred_region
              loop: start=0, step=1, limit=1
              $region41: #{tpu_custom_call.1} parent=39 // loop_pre_header
                _
              $region42: #{tpu_custom_call.1} parent=39 // loop_header
                %s149 = sphi 0, %s153
                %p150 = scmp.ge.s32.totalorder %s149, 1
                %s154 = sphi %s140, %s140
                %s155 = sphi %s137, %s137
              $region43: #{tpu_custom_call.1} parent=39 // loop_header_branch
                %152 = sbr.rel (%p150) target = $region47
              $region44: #{tpu_custom_call.1} parent=39 // loop_body
                %v156 = vld [vmem:[%s154] sm:$0xff]
                %157 = vst [vmem:[%s155] sm:$0xff] %v156
                %v158 = vld [vmem:[%s154 + $0x8] sm:$0xff]
                %159 = vst [vmem:[%s155 + $0x8] sm:$0xff] %v158
                %v160 = vld [vmem:[%s154 + $0x10] sm:$0xff]
                %161 = vst [vmem:[%s155 + $0x10] sm:$0xff] %v160
                %v162 = vld [vmem:[%s154 + $0x18] sm:$0xff]
                %163 = vst [vmem:[%s155 + $0x18] sm:$0xff] %v162
                %v164 = vld [vmem:[%s154 + $0x80] sm:$0xff]
                %165 = vst [vmem:[%s155 + $0x20] sm:$0xff] %v164
                %v166 = vld [vmem:[%s154 + $0x88] sm:$0xff]
                %167 = vst [vmem:[%s155 + $0x28] sm:$0xff] %v166
                %v168 = vld [vmem:[%s154 + $0x90] sm:$0xff]
                %169 = vst [vmem:[%s155 + $0x30] sm:$0xff] %v168
                %v170 = vld [vmem:[%s154 + $0x98] sm:$0xff]
                %171 = vst [vmem:[%s155 + $0x38] sm:$0xff] %v170
                %v172 = vld [vmem:[%s154 + $0x100] sm:$0xff]
                %173 = vst [vmem:[%s155 + $0x40] sm:$0xff] %v172
                %v174 = vld [vmem:[%s154 + $0x108] sm:$0xff]
                %175 = vst [vmem:[%s155 + $0x48] sm:$0xff] %v174
                %v176 = vld [vmem:[%s154 + $0x110] sm:$0xff]
                %177 = vst [vmem:[%s155 + $0x50] sm:$0xff] %v176
                %v178 = vld [vmem:[%s154 + $0x118] sm:$0xff]
                %179 = vst [vmem:[%s155 + $0x58] sm:$0xff] %v178
                %v180 = vld [vmem:[%s154 + $0x180] sm:$0xff]
                %181 = vst [vmem:[%s155 + $0x60] sm:$0xff] %v180
                %v182 = vld [vmem:[%s154 + $0x188] sm:$0xff]
                %183 = vst [vmem:[%s155 + $0x68] sm:$0xff] %v182
                %v184 = vld [vmem:[%s154 + $0x190] sm:$0xff]
                %185 = vst [vmem:[%s155 + $0x70] sm:$0xff] %v184
                %v186 = vld [vmem:[%s154 + $0x198] sm:$0xff]
                %187 = vst [vmem:[%s155 + $0x78] sm:$0xff] %v186
                %v188 = vld [vmem:[%s154 + $0x200] sm:$0xff]
                %189 = vst [vmem:[%s155 + $0x80] sm:$0xff] %v188
                %v190 = vld [vmem:[%s154 + $0x208] sm:$0xff]
                %191 = vst [vmem:[%s155 + $0x88] sm:$0xff] %v190
                %v192 = vld [vmem:[%s154 + $0x210] sm:$0xff]
                %193 = vst [vmem:[%s155 + $0x90] sm:$0xff] %v192
                %v194 = vld [vmem:[%s154 + $0x218] sm:$0xff]
                %195 = vst [vmem:[%s155 + $0x98] sm:$0xff] %v194
                %v196 = vld [vmem:[%s154 + $0x280] sm:$0xff]
                %197 = vst [vmem:[%s155 + $0xa0] sm:$0xff] %v196
                %v198 = vld [vmem:[%s154 + $0x288] sm:$0xff]
                %199 = vst [vmem:[%s155 + $0xa8] sm:$0xff] %v198
                %v200 = vld [vmem:[%s154 + $0x290] sm:$0xff]
                %201 = vst [vmem:[%s155 + $0xb0] sm:$0xff] %v200
                %v202 = vld [vmem:[%s154 + $0x298] sm:$0xff]
                %203 = vst [vmem:[%s155 + $0xb8] sm:$0xff] %v202
                %v204 = vld [vmem:[%s154 + $0x300] sm:$0xff]
                %205 = vst [vmem:[%s155 + $0xc0] sm:$0xff] %v204
                %v206 = vld [vmem:[%s154 + $0x308] sm:$0xff]
                %207 = vst [vmem:[%s155 + $0xc8] sm:$0xff] %v206
                %v208 = vld [vmem:[%s154 + $0x310] sm:$0xff]
                %209 = vst [vmem:[%s155 + $0xd0] sm:$0xff] %v208
                %v210 = vld [vmem:[%s154 + $0x318] sm:$0xff]
                %211 = vst [vmem:[%s155 + $0xd8] sm:$0xff] %v210
                %v212 = vld [vmem:[%s154 + $0x380] sm:$0xff]
                %213 = vst [vmem:[%s155 + $0xe0] sm:$0xff] %v212
                %v214 = vld [vmem:[%s154 + $0x388] sm:$0xff]
                %215 = vst [vmem:[%s155 + $0xe8] sm:$0xff] %v214
                %v216 = vld [vmem:[%s154 + $0x390] sm:$0xff]
                %217 = vst [vmem:[%s155 + $0xf0] sm:$0xff] %v216
                %v218 = vld [vmem:[%s154 + $0x398] sm:$0xff]
                %219 = vst [vmem:[%s155 + $0xf8] sm:$0xff] %v218
              $region45: #{tpu_custom_call.1} parent=39 // loop_footer
                %s153 = sadd.s32 1, %s149
              $region46: #{tpu_custom_call.1} parent=39 // loop_footer_branch
                %148 = sbr.rel target = $region42
              $region47: #{tpu_custom_call.1} parent=39 // loop_exit
                _
            $region40: #{tpu_custom_call.1} parent=31 // pred_fallthru
              _
          $region32: #{tpu_custom_call.1} parent=27 // pred_fallthru
            _
          %296 = vnop
        $region28: #{tpu_custom_call.1} parent=23 // pred_fallthru
          _
      $region24: #{tpu_custom_call.1} parent=5 // pred_fallthru
        _
      %p297 = scmp.le.s32.totalorder 1, %s12
      %p298 = scmp.lt.s32.totalorder %s12, 5
      %p299 = pnand %p297, %p298
      %p300 = pneg %p299
      // Predicated region
      $region63: #{tpu_custom_call.1} parent=5 // pred_check
        _
      $region64: #{tpu_custom_call.1} parent=5 // pred_check_branch
        %302 = sbr.rel (%p299) target = $region66
      $region65: #{tpu_custom_call.1} parent=5 // pred_region
        %s303 = ssub.s32 %s12, 1
        %s304 = sand.u32 %s25, 1
        %s305 = sand.u32 %s25, 1
        %s306 = smul.addr %s305, 256
        %s307 = scalar_lea.vmem [#allocation2], %s306
        // Predicated region
        $region67: #{tpu_custom_call.1} parent=65 // pred_check
          %p308 = pneg %p38
        $region68: #{tpu_custom_call.1} parent=65 // pred_check_branch
          %310 = sbr.rel (%p308) target = $region70
        $region69: #{tpu_custom_call.1} parent=65 // pred_region
          _
        $region70: #{tpu_custom_call.1} parent=65 // pred_fallthru
          _
        %s311 = sand.u32 %s25, 1
        %s312 = sand.u32 %s25, 1
        %s313 = smul.addr %s312, 256
        %s314 = scalar_lea.vmem [#allocation2], %s313
        %p315 = pneg %p38
        %p316 = pneg %p35
        %p317 = pneg %p59
        %p318 = pneg %p56
        %p319 = pneg %p80
        %p320 = pneg %p77
        %p321 = pneg %p106
        %p322 = pneg %p103
        %s323 = sand.u32 %s93, 1
        %s324 = scalar_lea.sflag [#allocation4], %s323
        %s325 = sand.u32 %s93, 1
        %s326 = smul.addr %s325, 256
        %s327 = scalar_lea.vmem [#allocation3], %s326
        %s328 = smul.u32 4, %s17
        %s329 = smul.u32 4, %s17
        %v330 = vld [vmem:[%s1] sm:$0xff]
        %v331 = vld [vmem:[%s1 + $0x8] sm:$0xff]
        %v332 = vld [vmem:[%s1 + $0x10] sm:$0xff]
        %v333 = vld [vmem:[%s1 + $0x18] sm:$0xff]
        %v334 = vld [vmem:[%s2] sm:$0x1]
        %v335 = vld [vmem:[%s307] sm:$0xff]
        %v336 = vld [vmem:[%s307 + $0x8] sm:$0xff]
        %v337 = vld [vmem:[%s307 + $0x10] sm:$0xff]
        %v338 = vld [vmem:[%s307 + $0x18] sm:$0xff]
        %v340 = vlaneseq
        %v341 = vshrl.u32 %v340, 7
        %v342 = vsub.s32 0, %v341
        %v343 = vrot.slane %v334, %v342
        %vm345 = vcmask 261120
        %v347 = vsel %vm345, %v335, 0
        %v350 = vsel %vm345, %v336, 0
        %v353 = vsel %vm345, %v337, 0
        %v356 = vsel %vm345, %v338, 0
        %358 = vmatprep.subr.mxu0 0.0
        %359 = vmatpush1.msra.mxu0 %v330
        %360 = vmatprep.subr.mxu0 0.0
        %361 = vmatpush1.msra.mxu0 %v331
        %362 = vmatprep.subr.mxu0 0.0
        %363 = vmatpush1.msra.mxu0 %v332
        %364 = vmatprep.subr.mxu0 0.0
        %365 = vmatpush1.msra.mxu0 %v333
        %366 = vmatprep.subr.mxu0 0.0
        %367 = vmatpush1.msra.mxu0 0.0
        %368 = vmatprep.subr.mxu0 0.0
        %369 = vmatpush1.msra.mxu0 0.0
        %370 = vmatprep.subr.mxu0 0.0
        %371 = vmatpush1.msra.mxu0 0.0
        %372 = vmatprep.subr.mxu0 0.0
        %373 = vmatpush1.msra.mxu0 0.0
        %374 = vmatprep.subr.mxu0 0.0
        %375 = vmatpush1.msra.mxu0 0.0
        %376 = vmatprep.subr.mxu0 0.0
        %377 = vmatpush1.msra.mxu0 0.0
        %378 = vmatprep.subr.mxu0 0.0
        %379 = vmatpush1.msra.mxu0 0.0
        %380 = vmatprep.subr.mxu0 0.0
        %381 = vmatpush1.msra.mxu0 0.0
        %382 = vmatprep.subr.mxu0 0.0
        %383 = vmatpush1.msra.mxu0 0.0
        %384 = vmatprep.subr.mxu0 0.0
        %385 = vmatpush1.msra.mxu0 0.0
        %386 = vmatprep.subr.mxu0 0.0
        %387 = vmatpush1.msra.mxu0 0.0
        %388 = vmatprep.subr.mxu0 0.0
        %389 = vmatpush1.msra.mxu0 0.0
        %390 = vmatprep.subr.mxu0 0.0
        %391 = vmatpush1.msra.mxu0 0.0
        %392 = vmatprep.subr.mxu0 0.0
        %393 = vmatpush1.msra.mxu0 0.0
        %394 = vmatprep.subr.mxu0 0.0
        %395 = vmatpush1.msra.mxu0 0.0
        %396 = vmatprep.subr.mxu0 0.0
        %397 = vmatpush1.msra.mxu0 0.0
        %398 = vmatprep.subr.mxu0 0.0
        %399 = vmatpush1.msra.mxu0 0.0
        %400 = vmatprep.subr.mxu0 0.0
        %401 = vmatpush1.msra.mxu0 0.0
        %402 = vmatprep.subr.mxu0 0.0
        %403 = vmatpush1.msra.mxu0 0.0
        %404 = vmatprep.subr.mxu0 0.0
        %405 = vmatpush1.msra.mxu0 0.0
        %406 = vmatprep.subr.mxu0 0.0
        %407 = vmatpush1.msra.mxu0 0.0
        %408 = vmatprep.subr.mxu0 0.0
        %409 = vmatpush1.msra.mxu0 0.0
        %410 = vmatprep.subr.mxu0 0.0
        %411 = vmatpush1.msra.mxu0 0.0
        %412 = vmatprep.subr.mxu0 0.0
        %413 = vmatpush1.msra.mxu0 0.0
        %414 = vmatprep.subr.mxu0 0.0
        %415 = vmatpush1.msra.mxu0 0.0
        %416 = vmatprep.subr.mxu0 0.0
        %417 = vmatpush1.msra.mxu0 0.0
        %418 = vmatprep.subr.mxu0 0.0
        %419 = vmatpush1.msra.mxu0 0.0
        %420 = vmatprep.subr.mxu0 0.0
        %421 = vmatpush1.msra.mxu0 0.0
        %422 = vmatprep.mubr.f32.mxu0 0.0
        %423 = vmatmul.mubr.f32.gmra.mrb[0].mxu0 %v347
        %v424 = vpop.f32.mrb[0].mxu0
        %v425 = vadd.f32 %v343, %v424
        %v426 = vpop.f32.mrb[0].mxu0
        %427 = vmatprep.mubr.f32.mxu0 0.0
        %428 = vmatmul.mubr.f32.gmra.mrb[0].mxu0 %v350
        %v429 = vpop.f32.mrb[0].mxu0
        %v430 = vadd.f32 %v343, %v429
        %v431 = vpop.f32.mrb[0].mxu0
        %432 = vmatprep.mubr.f32.mxu0 0.0
        %433 = vmatmul.mubr.f32.gmra.mrb[0].mxu0 %v353
        %v434 = vpop.f32.mrb[0].mxu0
        %v435 = vadd.f32 %v343, %v434
        %v436 = vpop.f32.mrb[0].mxu0
        %437 = vmatprep.mubr.f32.mxu0 0.0
        %438 = vmatmul.mubr.f32.gmra.mrb[0].mxu0 %v356
        %v439 = vpop.f32.mrb[0].mxu0
        %v440 = vadd.f32 %v343, %v439
        %v441 = vpop.f32.mrb[0].mxu0
        %442 = vdwg.mxu0
        %443 = vst [vmem:[%s327] sm:$0xff] %v425
        %444 = vst [vmem:[%s327 + $0x8] sm:$0xff] %v430
        %445 = vst [vmem:[%s327 + $0x10] sm:$0xff] %v435
        %446 = vst [vmem:[%s327 + $0x18] sm:$0xff] %v440
        %s447 = scalar_lea.vmem %s307, 32 [#allocation2]
        %v448 = vld [vmem:[%s447] sm:$0xff]
        %v449 = vld [vmem:[%s447 + $0x8] sm:$0xff]
        %v450 = vld [vmem:[%s447 + $0x10] sm:$0xff]
        %v451 = vld [vmem:[%s447 + $0x18] sm:$0xff]
        %v453 = vsel %vm345, %v448, 0
        %v456 = vsel %vm345, %v449, 0
        %v459 = vsel %vm345, %v450, 0
        %v462 = vsel %vm345, %v451, 0
        %464 = vmatprep.subr.mxu0 0.0
        %465 = vmatpush1.msra.mxu0 %v330
        %466 = vmatprep.subr.mxu0 0.0
        %467 = vmatpush1.msra.mxu0 %v331
        %468 = vmatprep.subr.mxu0 0.0
        %469 = vmatpush1.msra.mxu0 %v332
        %470 = vmatprep.subr.mxu0 0.0
        %471 = vmatpush1.msra.mxu0 %v333
        %472 = vmatprep.subr.mxu0 0.0
        %473 = vmatpush1.msra.mxu0 0.0
        %474 = vmatprep.subr.mxu0 0.0
        %475 = vmatpush1.msra.mxu0 0.0
        %476 = vmatprep.subr.mxu0 0.0
        %477 = vmatpush1.msra.mxu0 0.0
        %478 = vmatprep.subr.mxu0 0.0
        %479 = vmatpush1.msra.mxu0 0.0
        %480 = vmatprep.subr.mxu0 0.0
        %481 = vmatpush1.msra.mxu0 0.0
        %482 = vmatprep.subr.mxu0 0.0
        %483 = vmatpush1.msra.mxu0 0.0
        %484 = vmatprep.subr.mxu0 0.0
        %485 = vmatpush1.msra.mxu0 0.0
        %486 = vmatprep.subr.mxu0 0.0
        %487 = vmatpush1.msra.mxu0 0.0
        %488 = vmatprep.subr.mxu0 0.0
        %489 = vmatpush1.msra.mxu0 0.0
        %490 = vmatprep.subr.mxu0 0.0
        %491 = vmatpush1.msra.mxu0 0.0
        %492 = vmatprep.subr.mxu0 0.0
        %493 = vmatpush1.msra.mxu0 0.0
        %494 = vmatprep.subr.mxu0 0.0
        %495 = vmatpush1.msra.mxu0 0.0
        %496 = vmatprep.subr.mxu0 0.0
        %497 = vmatpush1.msra.mxu0 0.0
        %498 = vmatprep.subr.mxu0 0.0
        %499 = vmatpush1.msra.mxu0 0.0
        %500 = vmatprep.subr.mxu0 0.0
        %501 = vmatpush1.msra.mxu0 0.0
        %502 = vmatprep.subr.mxu0 0.0
        %503 = vmatpush1.msra.mxu0 0.0
        %504 = vmatprep.subr.mxu0 0.0
        %505 = vmatpush1.msra.mxu0 0.0
        %506 = vmatprep.subr.mxu0 0.0
        %507 = vmatpush1.msra.mxu0 0.0
        %508 = vmatprep.subr.mxu0 0.0
        %509 = vmatpush1.msra.mxu0 0.0
        %510 = vmatprep.subr.mxu0 0.0
        %511 = vmatpush1.msra.mxu0 0.0
        %512 = vmatprep.subr.mxu0 0.0
        %513 = vmatpush1.msra.mxu0 0.0
        %514 = vmatprep.subr.mxu0 0.0
        %515 = vmatpush1.msra.mxu0 0.0
        %516 = vmatprep.subr.mxu0 0.0
        %517 = vmatpush1.msra.mxu0 0.0
        %518 = vmatprep.subr.mxu0 0.0
        %519 = vmatpush1.msra.mxu0 0.0
        %520 = vmatprep.subr.mxu0 0.0
        %521 = vmatpush1.msra.mxu0 0.0
        %522 = vmatprep.subr.mxu0 0.0
        %523 = vmatpush1.msra.mxu0 0.0
        %524 = vmatprep.subr.mxu0 0.0
        %525 = vmatpush1.msra.mxu0 0.0
        %526 = vmatprep.subr.mxu0 0.0
        %527 = vmatpush1.msra.mxu0 0.0
        %528 = vmatprep.mubr.f32.mxu0 0.0
        %529 = vmatmul.mubr.f32.gmra.mrb[0].mxu0 %v453
        %v530 = vpop.f32.mrb[0].mxu0
        %v531 = vadd.f32 %v343, %v530
        %v532 = vpop.f32.mrb[0].mxu0
        %533 = vmatprep.mubr.f32.mxu0 0.0
        %534 = vmatmul.mubr.f32.gmra.mrb[0].mxu0 %v456
        %v535 = vpop.f32.mrb[0].mxu0
        %v536 = vadd.f32 %v343, %v535
        %v537 = vpop.f32.mrb[0].mxu0
        %538 = vmatprep.mubr.f32.mxu0 0.0
        %539 = vmatmul.mubr.f32.gmra.mrb[0].mxu0 %v459
        %v540 = vpop.f32.mrb[0].mxu0
        %v541 = vadd.f32 %v343, %v540
        %v542 = vpop.f32.mrb[0].mxu0
        %543 = vmatprep.mubr.f32.mxu0 0.0
        %544 = vmatmul.mubr.f32.gmra.mrb[0].mxu0 %v462
        %v545 = vpop.f32.mrb[0].mxu0
        %v546 = vadd.f32 %v343, %v545
        %v547 = vpop.f32.mrb[0].mxu0
        %548 = vdwg.mxu0
        %s549 = scalar_lea.vmem %s327, 32 [#allocation3]
        %550 = vst [vmem:[%s549] sm:$0xff] %v531
        %551 = vst [vmem:[%s549 + $0x8] sm:$0xff] %v536
        %552 = vst [vmem:[%s549 + $0x10] sm:$0xff] %v541
        %553 = vst [vmem:[%s549 + $0x18] sm:$0xff] %v546
        %v554 = vmax.f32 %v425, %v531
        %v555 = vmax.f32 %v430, %v536
        %v556 = vmax.f32 %v435, %v541
        %v557 = vmax.f32 %v440, %v546
        %s558 = scalar_lea.vmem %s307, 64 [#allocation2]
        %v559 = vld [vmem:[%s558] sm:$0xff]
        %v560 = vld [vmem:[%s558 + $0x8] sm:$0xff]
        %v561 = vld [vmem:[%s558 + $0x10] sm:$0xff]
        %v562 = vld [vmem:[%s558 + $0x18] sm:$0xff]
        %v564 = vsel %vm345, %v559, 0
        %v567 = vsel %vm345, %v560, 0
        %v570 = vsel %vm345, %v561, 0
        %v573 = vsel %vm345, %v562, 0
        %575 = vmatprep.subr.mxu0 0.0
        %576 = vmatpush1.msra.mxu0 %v330
        %577 = vmatprep.subr.mxu0 0.0
        %578 = vmatpush1.msra.mxu0 %v331
        %579 = vmatprep.subr.mxu0 0.0
        %580 = vmatpush1.msra.mxu0 %v332
        %581 = vmatprep.subr.mxu0 0.0
        %582 = vmatpush1.msra.mxu0 %v333
        %583 = vmatprep.subr.mxu0 0.0
        %584 = vmatpush1.msra.mxu0 0.0
        %585 = vmatprep.subr.mxu0 0.0
        %586 = vmatpush1.msra.mxu0 0.0
        %587 = vmatprep.subr.mxu0 0.0
        %588 = vmatpush1.msra.mxu0 0.0
        %589 = vmatprep.subr.mxu0 0.0
        %590 = vmatpush1.msra.mxu0 0.0
        %591 = vmatprep.subr.mxu0 0.0
        %592 = vmatpush1.msra.mxu0 0.0
        %593 = vmatprep.subr.mxu0 0.0
        %594 = vmatpush1.msra.mxu0 0.0
        %595 = vmatprep.subr.mxu0 0.0
        %596 = vmatpush1.msra.mxu0 0.0
        %597 = vmatprep.subr.mxu0 0.0
        %598 = vmatpush1.msra.mxu0 0.0
        %599 = vmatprep.subr.mxu0 0.0
        %600 = vmatpush1.msra.mxu0 0.0
        %601 = vmatprep.subr.mxu0 0.0
        %602 = vmatpush1.msra.mxu0 0.0
        %603 = vmatprep.subr.mxu0 0.0
        %604 = vmatpush1.msra.mxu0 0.0
        %605 = vmatprep.subr.mxu0 0.0
        %606 = vmatpush1.msra.mxu0 0.0
        %607 = vmatprep.subr.mxu0 0.0
        %608 = vmatpush1.msra.mxu0 0.0
        %609 = vmatprep.subr.mxu0 0.0
        %610 = vmatpush1.msra.mxu0 0.0
        %611 = vmatprep.subr.mxu0 0.0
        %612 = vmatpush1.msra.mxu0 0.0
        %613 = vmatprep.subr.mxu0 0.0
        %614 = vmatpush1.msra.mxu0 0.0
        %615 = vmatprep.subr.mxu0 0.0
        %616 = vmatpush1.msra.mxu0 0.0
        %617 = vmatprep.subr.mxu0 0.0
        %618 = vmatpush1.msra.mxu0 0.0
        %619 = vmatprep.subr.mxu0 0.0
        %620 = vmatpush1.msra.mxu0 0.0
        %621 = vmatprep.subr.mxu0 0.0
        %622 = vmatpush1.msra.mxu0 0.0
        %623 = vmatprep.subr.mxu0 0.0
        %624 = vmatpush1.msra.mxu0 0.0
        %625 = vmatprep.subr.mxu0 0.0
        %626 = vmatpush1.msra.mxu0 0.0
        %627 = vmatprep.subr.mxu0 0.0
        %628 = vmatpush1.msra.mxu0 0.0
        %629 = vmatprep.subr.mxu0 0.0
        %630 = vmatpush1.msra.mxu0 0.0
        %631 = vmatprep.subr.mxu0 0.0
        %632 = vmatpush1.msra.mxu0 0.0
        %633 = vmatprep.subr.mxu0 0.0
        %634 = vmatpush1.msra.mxu0 0.0
        %635 = vmatprep.subr.mxu0 0.0
        %636 = vmatpush1.msra.mxu0 0.0
        %637 = vmatprep.subr.mxu0 0.0
        %638 = vmatpush1.msra.mxu0 0.0
        %639 = vmatprep.mubr.f32.mxu0 0.0
        %640 = vmatmul.mubr.f32.gmra.mrb[0].mxu0 %v564
        %v641 = vpop.f32.mrb[0].mxu0
        %v642 = vadd.f32 %v343, %v641
        %v643 = vpop.f32.mrb[0].mxu0
        %644 = vmatprep.mubr.f32.mxu0 0.0
        %645 = vmatmul.mubr.f32.gmra.mrb[0].mxu0 %v567
        %v646 = vpop.f32.mrb[0].mxu0
        %v647 = vadd.f32 %v343, %v646
        %v648 = vpop.f32.mrb[0].mxu0
        %649 = vmatprep.mubr.f32.mxu0 0.0
        %650 = vmatmul.mubr.f32.gmra.mrb[0].mxu0 %v570
        %v651 = vpop.f32.mrb[0].mxu0
        %v652 = vadd.f32 %v343, %v651
        %v653 = vpop.f32.mrb[0].mxu0
        %654 = vmatprep.mubr.f32.mxu0 0.0
        %655 = vmatmul.mubr.f32.gmra.mrb[0].mxu0 %v573
        %v656 = vpop.f32.mrb[0].mxu0
        %v657 = vadd.f32 %v343, %v656
        %v658 = vpop.f32.mrb[0].mxu0
        %659 = vdwg.mxu0
        %s660 = scalar_lea.vmem %s327, 64 [#allocation3]
        %661 = vst [vmem:[%s660] sm:$0xff] %v642
        %662 = vst [vmem:[%s660 + $0x8] sm:$0xff] %v647
        %663 = vst [vmem:[%s660 + $0x10] sm:$0xff] %v652
        %664 = vst [vmem:[%s660 + $0x18] sm:$0xff] %v657
        %v665 = vmax.f32 %v554, %v642
        %v666 = vmax.f32 %v555, %v647
        %v667 = vmax.f32 %v556, %v652
        %v668 = vmax.f32 %v557, %v657
        %s669 = scalar_lea.vmem %s307, 96 [#allocation2]
        %v670 = vld [vmem:[%s669] sm:$0xff]
        %v671 = vld [vmem:[%s669 + $0x8] sm:$0xff]
        %v672 = vld [vmem:[%s669 + $0x10] sm:$0xff]
        %v673 = vld [vmem:[%s669 + $0x18] sm:$0xff]
        %v675 = vsel %vm345, %v670, 0
        %v678 = vsel %vm345, %v671, 0
        %v681 = vsel %vm345, %v672, 0
        %v684 = vsel %vm345, %v673, 0
        %686 = vmatprep.subr.mxu0 0.0
        %687 = vmatpush1.msra.mxu0 %v330
        %688 = vmatprep.subr.mxu0 0.0
        %689 = vmatpush1.msra.mxu0 %v331
        %690 = vmatprep.subr.mxu0 0.0
        %691 = vmatpush1.msra.mxu0 %v332
        %692 = vmatprep.subr.mxu0 0.0
        %693 = vmatpush1.msra.mxu0 %v333
        %694 = vmatprep.subr.mxu0 0.0
        %695 = vmatpush1.msra.mxu0 0.0
        %696 = vmatprep.subr.mxu0 0.0
        %697 = vmatpush1.msra.mxu0 0.0
        %698 = vmatprep.subr.mxu0 0.0
        %699 = vmatpush1.msra.mxu0 0.0
        %700 = vmatprep.subr.mxu0 0.0
        %701 = vmatpush1.msra.mxu0 0.0
        %702 = vmatprep.subr.mxu0 0.0
        %703 = vmatpush1.msra.mxu0 0.0
        %704 = vmatprep.subr.mxu0 0.0
        %705 = vmatpush1.msra.mxu0 0.0
        %706 = vmatprep.subr.mxu0 0.0
        %707 = vmatpush1.msra.mxu0 0.0
        %708 = vmatprep.subr.mxu0 0.0
        %709 = vmatpush1.msra.mxu0 0.0
        %710 = vmatprep.subr.mxu0 0.0
        %711 = vmatpush1.msra.mxu0 0.0
        %712 = vmatprep.subr.mxu0 0.0
        %713 = vmatpush1.msra.mxu0 0.0
        %714 = vmatprep.subr.mxu0 0.0
        %715 = vmatpush1.msra.mxu0 0.0
        %716 = vmatprep.subr.mxu0 0.0
        %717 = vmatpush1.msra.mxu0 0.0
        %718 = vmatprep.subr.mxu0 0.0
        %719 = vmatpush1.msra.mxu0 0.0
        %720 = vmatprep.subr.mxu0 0.0
        %721 = vmatpush1.msra.mxu0 0.0
        %722 = vmatprep.subr.mxu0 0.0
        %723 = vmatpush1.msra.mxu0 0.0
        %724 = vmatprep.subr.mxu0 0.0
        %725 = vmatpush1.msra.mxu0 0.0
        %726 = vmatprep.subr.mxu0 0.0
        %727 = vmatpush1.msra.mxu0 0.0
        %728 = vmatprep.subr.mxu0 0.0
        %729 = vmatpush1.msra.mxu0 0.0
        %730 = vmatprep.subr.mxu0 0.0
        %731 = vmatpush1.msra.mxu0 0.0
        %732 = vmatprep.subr.mxu0 0.0
        %733 = vmatpush1.msra.mxu0 0.0
        %734 = vmatprep.subr.mxu0 0.0
        %735 = vmatpush1.msra.mxu0 0.0
        %736 = vmatprep.subr.mxu0 0.0
        %737 = vmatpush1.msra.mxu0 0.0
        %738 = vmatprep.subr.mxu0 0.0
        %739 = vmatpush1.msra.mxu0 0.0
        %740 = vmatprep.subr.mxu0 0.0
        %741 = vmatpush1.msra.mxu0 0.0
        %742 = vmatprep.subr.mxu0 0.0
        %743 = vmatpush1.msra.mxu0 0.0
        %744 = vmatprep.subr.mxu0 0.0
        %745 = vmatpush1.msra.mxu0 0.0
        %746 = vmatprep.subr.mxu0 0.0
        %747 = vmatpush1.msra.mxu0 0.0
        %748 = vmatprep.subr.mxu0 0.0
        %749 = vmatpush1.msra.mxu0 0.0
        %750 = vmatprep.mubr.f32.mxu0 0.0
        %751 = vmatmul.mubr.f32.gmra.mrb[0].mxu0 %v675
        %v752 = vpop.f32.mrb[0].mxu0
        %v753 = vadd.f32 %v343, %v752
        %v754 = vpop.f32.mrb[0].mxu0
        %755 = vmatprep.mubr.f32.mxu0 0.0
        %756 = vmatmul.mubr.f32.gmra.mrb[0].mxu0 %v678
        %v757 = vpop.f32.mrb[0].mxu0
        %v758 = vadd.f32 %v343, %v757
        %v759 = vpop.f32.mrb[0].mxu0
        %760 = vmatprep.mubr.f32.mxu0 0.0
        %761 = vmatmul.mubr.f32.gmra.mrb[0].mxu0 %v681
        %v762 = vpop.f32.mrb[0].mxu0
        %v763 = vadd.f32 %v343, %v762
        %v764 = vpop.f32.mrb[0].mxu0
        %765 = vmatprep.mubr.f32.mxu0 0.0
        %766 = vmatmul.mubr.f32.gmra.mrb[0].mxu0 %v684
        %v767 = vpop.f32.mrb[0].mxu0
        %v768 = vadd.f32 %v343, %v767
        %v769 = vpop.f32.mrb[0].mxu0
        %770 = vdwg.mxu0
        %s771 = scalar_lea.vmem %s327, 96 [#allocation3]
        %772 = vst [vmem:[%s771] sm:$0xff] %v753
        %773 = vst [vmem:[%s771 + $0x8] sm:$0xff] %v758
        %774 = vst [vmem:[%s771 + $0x10] sm:$0xff] %v763
        %775 = vst [vmem:[%s771 + $0x18] sm:$0xff] %v768
        %v776 = vmax.f32 %v665, %v753
        %v777 = vmax.f32 %v666, %v758
        %v778 = vmax.f32 %v667, %v763
        %v779 = vmax.f32 %v668, %v768
        %s780 = scalar_lea.vmem %s307, 128 [#allocation2]
        %v781 = vld [vmem:[%s780] sm:$0xff]
        %v782 = vld [vmem:[%s780 + $0x8] sm:$0xff]
        %v783 = vld [vmem:[%s780 + $0x10] sm:$0xff]
        %v784 = vld [vmem:[%s780 + $0x18] sm:$0xff]
        %v786 = vsel %vm345, %v781, 0
        %v789 = vsel %vm345, %v782, 0
        %v792 = vsel %vm345, %v783, 0
        %v795 = vsel %vm345, %v784, 0
        %797 = vmatprep.subr.mxu0 0.0
        %798 = vmatpush1.msra.mxu0 %v330
        %799 = vmatprep.subr.mxu0 0.0
        %800 = vmatpush1.msra.mxu0 %v331
        %801 = vmatprep.subr.mxu0 0.0
        %802 = vmatpush1.msra.mxu0 %v332
        %803 = vmatprep.subr.mxu0 0.0
        %804 = vmatpush1.msra.mxu0 %v333
        %805 = vmatprep.subr.mxu0 0.0
        %806 = vmatpush1.msra.mxu0 0.0
        %807 = vmatprep.subr.mxu0 0.0
        %808 = vmatpush1.msra.mxu0 0.0
        %809 = vmatprep.subr.mxu0 0.0
        %810 = vmatpush1.msra.mxu0 0.0
        %811 = vmatprep.subr.mxu0 0.0
        %812 = vmatpush1.msra.mxu0 0.0
        %813 = vmatprep.subr.mxu0 0.0
        %814 = vmatpush1.msra.mxu0 0.0
        %815 = vmatprep.subr.mxu0 0.0
        %816 = vmatpush1.msra.mxu0 0.0
        %817 = vmatprep.subr.mxu0 0.0
        %818 = vmatpush1.msra.mxu0 0.0
        %819 = vmatprep.subr.mxu0 0.0
        %820 = vmatpush1.msra.mxu0 0.0
        %821 = vmatprep.subr.mxu0 0.0
        %822 = vmatpush1.msra.mxu0 0.0
        %823 = vmatprep.subr.mxu0 0.0
        %824 = vmatpush1.msra.mxu0 0.0
        %825 = vmatprep.subr.mxu0 0.0
        %826 = vmatpush1.msra.mxu0 0.0
        %827 = vmatprep.subr.mxu0 0.0
        %828 = vmatpush1.msra.mxu0 0.0
        %829 = vmatprep.subr.mxu0 0.0
        %830 = vmatpush1.msra.mxu0 0.0
        %831 = vmatprep.subr.mxu0 0.0
        %832 = vmatpush1.msra.mxu0 0.0
        %833 = vmatprep.subr.mxu0 0.0
        %834 = vmatpush1.msra.mxu0 0.0
        %835 = vmatprep.subr.mxu0 0.0
        %836 = vmatpush1.msra.mxu0 0.0
        %837 = vmatprep.subr.mxu0 0.0
        %838 = vmatpush1.msra.mxu0 0.0
        %839 = vmatprep.subr.mxu0 0.0
        %840 = vmatpush1.msra.mxu0 0.0
        %841 = vmatprep.subr.mxu0 0.0
        %842 = vmatpush1.msra.mxu0 0.0
        %843 = vmatprep.subr.mxu0 0.0
        %844 = vmatpush1.msra.mxu0 0.0
        %845 = vmatprep.subr.mxu0 0.0
        %846 = vmatpush1.msra.mxu0 0.0
        %847 = vmatprep.subr.mxu0 0.0
        %848 = vmatpush1.msra.mxu0 0.0
        %849 = vmatprep.subr.mxu0 0.0
        %850 = vmatpush1.msra.mxu0 0.0
        %851 = vmatprep.subr.mxu0 0.0
        %852 = vmatpush1.msra.mxu0 0.0
        %853 = vmatprep.subr.mxu0 0.0
        %854 = vmatpush1.msra.mxu0 0.0
        %855 = vmatprep.subr.mxu0 0.0
        %856 = vmatpush1.msra.mxu0 0.0
        %857 = vmatprep.subr.mxu0 0.0
        %858 = vmatpush1.msra.mxu0 0.0
        %859 = vmatprep.subr.mxu0 0.0
        %860 = vmatpush1.msra.mxu0 0.0
        %861 = vmatprep.mubr.f32.mxu0 0.0
        %862 = vmatmul.mubr.f32.gmra.mrb[0].mxu0 %v786
        %v863 = vpop.f32.mrb[0].mxu0
        %v864 = vadd.f32 %v343, %v863
        %v865 = vpop.f32.mrb[0].mxu0
        %866 = vmatprep.mubr.f32.mxu0 0.0
        %867 = vmatmul.mubr.f32.gmra.mrb[0].mxu0 %v789
        %v868 = vpop.f32.mrb[0].mxu0
        %v869 = vadd.f32 %v343, %v868
        %v870 = vpop.f32.mrb[0].mxu0
        %871 = vmatprep.mubr.f32.mxu0 0.0
        %872 = vmatmul.mubr.f32.gmra.mrb[0].mxu0 %v792
        %v873 = vpop.f32.mrb[0].mxu0
        %v874 = vadd.f32 %v343, %v873
        %v875 = vpop.f32.mrb[0].mxu0
        %876 = vmatprep.mubr.f32.mxu0 0.0
        %877 = vmatmul.mubr.f32.gmra.mrb[0].mxu0 %v795
        %v878 = vpop.f32.mrb[0].mxu0
        %v879 = vadd.f32 %v343, %v878
        %v880 = vpop.f32.mrb[0].mxu0
        %881 = vdwg.mxu0
        %s882 = scalar_lea.vmem %s327, 128 [#allocation3]
        %883 = vst [vmem:[%s882] sm:$0xff] %v864
        %884 = vst [vmem:[%s882 + $0x8] sm:$0xff] %v869
        %885 = vst [vmem:[%s882 + $0x10] sm:$0xff] %v874
        %886 = vst [vmem:[%s882 + $0x18] sm:$0xff] %v879
        %v887 = vmax.f32 %v776, %v864
        %v888 = vmax.f32 %v777, %v869
        %v889 = vmax.f32 %v778, %v874
        %v890 = vmax.f32 %v779, %v879
        %s891 = scalar_lea.vmem %s307, 160 [#allocation2]
        %v892 = vld [vmem:[%s891] sm:$0xff]
        %v893 = vld [vmem:[%s891 + $0x8] sm:$0xff]
        %v894 = vld [vmem:[%s891 + $0x10] sm:$0xff]
        %v895 = vld [vmem:[%s891 + $0x18] sm:$0xff]
        %v897 = vsel %vm345, %v892, 0
        %v900 = vsel %vm345, %v893, 0
        %v903 = vsel %vm345, %v894, 0
        %v906 = vsel %vm345, %v895, 0
        %908 = vmatprep.subr.mxu0 0.0
        %909 = vmatpush1.msra.mxu0 %v330
        %910 = vmatprep.subr.mxu0 0.0
        %911 = vmatpush1.msra.mxu0 %v331
        %912 = vmatprep.subr.mxu0 0.0
        %913 = vmatpush1.msra.mxu0 %v332
        %914 = vmatprep.subr.mxu0 0.0
        %915 = vmatpush1.msra.mxu0 %v333
        %916 = vmatprep.subr.mxu0 0.0
        %917 = vmatpush1.msra.mxu0 0.0
        %918 = vmatprep.subr.mxu0 0.0
        %919 = vmatpush1.msra.mxu0 0.0
        %920 = vmatprep.subr.mxu0 0.0
        %921 = vmatpush1.msra.mxu0 0.0
        %922 = vmatprep.subr.mxu0 0.0
        %923 = vmatpush1.msra.mxu0 0.0
        %924 = vmatprep.subr.mxu0 0.0
        %925 = vmatpush1.msra.mxu0 0.0
        %926 = vmatprep.subr.mxu0 0.0
        %927 = vmatpush1.msra.mxu0 0.0
        %928 = vmatprep.subr.mxu0 0.0
        %929 = vmatpush1.msra.mxu0 0.0
        %930 = vmatprep.subr.mxu0 0.0
        %931 = vmatpush1.msra.mxu0 0.0
        %932 = vmatprep.subr.mxu0 0.0
        %933 = vmatpush1.msra.mxu0 0.0
        %934 = vmatprep.subr.mxu0 0.0
        %935 = vmatpush1.msra.mxu0 0.0
        %936 = vmatprep.subr.mxu0 0.0
        %937 = vmatpush1.msra.mxu0 0.0
        %938 = vmatprep.subr.mxu0 0.0
        %939 = vmatpush1.msra.mxu0 0.0
        %940 = vmatprep.subr.mxu0 0.0
        %941 = vmatpush1.msra.mxu0 0.0
        %942 = vmatprep.subr.mxu0 0.0
        %943 = vmatpush1.msra.mxu0 0.0
        %944 = vmatprep.subr.mxu0 0.0
        %945 = vmatpush1.msra.mxu0 0.0
        %946 = vmatprep.subr.mxu0 0.0
        %947 = vmatpush1.msra.mxu0 0.0
        %948 = vmatprep.subr.mxu0 0.0
        %949 = vmatpush1.msra.mxu0 0.0
        %950 = vmatprep.subr.mxu0 0.0
        %951 = vmatpush1.msra.mxu0 0.0
        %952 = vmatprep.subr.mxu0 0.0
        %953 = vmatpush1.msra.mxu0 0.0
        %954 = vmatprep.subr.mxu0 0.0
        %955 = vmatpush1.msra.mxu0 0.0
        %956 = vmatprep.subr.mxu0 0.0
        %957 = vmatpush1.msra.mxu0 0.0
        %958 = vmatprep.subr.mxu0 0.0
        %959 = vmatpush1.msra.mxu0 0.0
        %960 = vmatprep.subr.mxu0 0.0
        %961 = vmatpush1.msra.mxu0 0.0
        %962 = vmatprep.subr.mxu0 0.0
        %963 = vmatpush1.msra.mxu0 0.0
        %964 = vmatprep.subr.mxu0 0.0
        %965 = vmatpush1.msra.mxu0 0.0
        %966 = vmatprep.subr.mxu0 0.0
        %967 = vmatpush1.msra.mxu0 0.0
        %968 = vmatprep.subr.mxu0 0.0
        %969 = vmatpush1.msra.mxu0 0.0
        %970 = vmatprep.subr.mxu0 0.0
        %971 = vmatpush1.msra.mxu0 0.0
        %972 = vmatprep.mubr.f32.mxu0 0.0
        %973 = vmatmul.mubr.f32.gmra.mrb[0].mxu0 %v897
        %v974 = vpop.f32.mrb[0].mxu0
        %v975 = vadd.f32 %v343, %v974
        %v976 = vpop.f32.mrb[0].mxu0
        %977 = vmatprep.mubr.f32.mxu0 0.0
        %978 = vmatmul.mubr.f32.gmra.mrb[0].mxu0 %v900
        %v979 = vpop.f32.mrb[0].mxu0
        %v980 = vadd.f32 %v343, %v979
        %v981 = vpop.f32.mrb[0].mxu0
        %982 = vmatprep.mubr.f32.mxu0 0.0
        %983 = vmatmul.mubr.f32.gmra.mrb[0].mxu0 %v903
        %v984 = vpop.f32.mrb[0].mxu0
        %v985 = vadd.f32 %v343, %v984
        %v986 = vpop.f32.mrb[0].mxu0
        %987 = vmatprep.mubr.f32.mxu0 0.0
        %988 = vmatmul.mubr.f32.gmra.mrb[0].mxu0 %v906
        %v989 = vpop.f32.mrb[0].mxu0
        %v990 = vadd.f32 %v343, %v989
        %v991 = vpop.f32.mrb[0].mxu0
        %992 = vdwg.mxu0
        %s993 = scalar_lea.vmem %s327, 160 [#allocation3]
        %994 = vst [vmem:[%s993] sm:$0xff] %v975
        %995 = vst [vmem:[%s993 + $0x8] sm:$0xff] %v980
        %996 = vst [vmem:[%s993 + $0x10] sm:$0xff] %v985
        %997 = vst [vmem:[%s993 + $0x18] sm:$0xff] %v990
        %v998 = vmax.f32 %v887, %v975
        %v999 = vmax.f32 %v888, %v980
        %v1000 = vmax.f32 %v889, %v985
        %v1001 = vmax.f32 %v890, %v990
        %s1002 = scalar_lea.vmem %s307, 192 [#allocation2]
        %v1003 = vld [vmem:[%s1002] sm:$0xff]
        %v1004 = vld [vmem:[%s1002 + $0x8] sm:$0xff]
        %v1005 = vld [vmem:[%s1002 + $0x10] sm:$0xff]
        %v1006 = vld [vmem:[%s1002 + $0x18] sm:$0xff]
        %v1008 = vsel %vm345, %v1003, 0
        %v1011 = vsel %vm345, %v1004, 0
        %v1014 = vsel %vm345, %v1005, 0
        %v1017 = vsel %vm345, %v1006, 0
        %1019 = vmatprep.subr.mxu0 0.0
        %1020 = vmatpush1.msra.mxu0 %v330
        %1021 = vmatprep.subr.mxu0 0.0
        %1022 = vmatpush1.msra.mxu0 %v331
        %1023 = vmatprep.subr.mxu0 0.0
        %1024 = vmatpush1.msra.mxu0 %v332
        %1025 = vmatprep.subr.mxu0 0.0
        %1026 = vmatpush1.msra.mxu0 %v333
        %1027 = vmatprep.subr.mxu0 0.0
        %1028 = vmatpush1.msra.mxu0 0.0
        %1029 = vmatprep.subr.mxu0 0.0
        %1030 = vmatpush1.msra.mxu0 0.0
        %1031 = vmatprep.subr.mxu0 0.0
        %1032 = vmatpush1.msra.mxu0 0.0
        %1033 = vmatprep.subr.mxu0 0.0
        %1034 = vmatpush1.msra.mxu0 0.0
        %1035 = vmatprep.subr.mxu0 0.0
        %1036 = vmatpush1.msra.mxu0 0.0
        %1037 = vmatprep.subr.mxu0 0.0
        %1038 = vmatpush1.msra.mxu0 0.0
        %1039 = vmatprep.subr.mxu0 0.0
        %1040 = vmatpush1.msra.mxu0 0.0
        %1041 = vmatprep.subr.mxu0 0.0
        %1042 = vmatpush1.msra.mxu0 0.0
        %1043 = vmatprep.subr.mxu0 0.0
        %1044 = vmatpush1.msra.mxu0 0.0
        %1045 = vmatprep.subr.mxu0 0.0
        %1046 = vmatpush1.msra.mxu0 0.0
        %1047 = vmatprep.subr.mxu0 0.0
        %1048 = vmatpush1.msra.mxu0 0.0
        %1049 = vmatprep.subr.mxu0 0.0
        %1050 = vmatpush1.msra.mxu0 0.0
        %1051 = vmatprep.subr.mxu0 0.0
        %1052 = vmatpush1.msra.mxu0 0.0
        %1053 = vmatprep.subr.mxu0 0.0
        %1054 = vmatpush1.msra.mxu0 0.0
        %1055 = vmatprep.subr.mxu0 0.0
        %1056 = vmatpush1.msra.mxu0 0.0
        %1057 = vmatprep.subr.mxu0 0.0
        %1058 = vmatpush1.msra.mxu0 0.0
        %1059 = vmatprep.subr.mxu0 0.0
        %1060 = vmatpush1.msra.mxu0 0.0
        %1061 = vmatprep.subr.mxu0 0.0
        %1062 = vmatpush1.msra.mxu0 0.0
        %1063 = vmatprep.subr.mxu0 0.0
        %1064 = vmatpush1.msra.mxu0 0.0
        %1065 = vmatprep.subr.mxu0 0.0
        %1066 = vmatpush1.msra.mxu0 0.0
        %1067 = vmatprep.subr.mxu0 0.0
        %1068 = vmatpush1.msra.mxu0 0.0
        %1069 = vmatprep.subr.mxu0 0.0
        %1070 = vmatpush1.msra.mxu0 0.0
        %1071 = vmatprep.subr.mxu0 0.0
        %1072 = vmatpush1.msra.mxu0 0.0
        %1073 = vmatprep.subr.mxu0 0.0
        %1074 = vmatpush1.msra.mxu0 0.0
        %1075 = vmatprep.subr.mxu0 0.0
        %1076 = vmatpush1.msra.mxu0 0.0
        %1077 = vmatprep.subr.mxu0 0.0
        %1078 = vmatpush1.msra.mxu0 0.0
        %1079 = vmatprep.subr.mxu0 0.0
        %1080 = vmatpush1.msra.mxu0 0.0
        %1081 = vmatprep.subr.mxu0 0.0
        %1082 = vmatpush1.msra.mxu0 0.0
        %1083 = vmatprep.mubr.f32.mxu0 0.0
        %1084 = vmatmul.mubr.f32.gmra.mrb[0].mxu0 %v1008
        %v1085 = vpop.f32.mrb[0].mxu0
        %v1086 = vadd.f32 %v343, %v1085
        %v1087 = vpop.f32.mrb[0].mxu0
        %1088 = vmatprep.mubr.f32.mxu0 0.0
        %1089 = vmatmul.mubr.f32.gmra.mrb[0].mxu0 %v1011
        %v1090 = vpop.f32.mrb[0].mxu0
        %v1091 = vadd.f32 %v343, %v1090
        %v1092 = vpop.f32.mrb[0].mxu0
        %1093 = vmatprep.mubr.f32.mxu0 0.0
        %1094 = vmatmul.mubr.f32.gmra.mrb[0].mxu0 %v1014
        %v1095 = vpop.f32.mrb[0].mxu0
        %v1096 = vadd.f32 %v343, %v1095
        %v1097 = vpop.f32.mrb[0].mxu0
        %1098 = vmatprep.mubr.f32.mxu0 0.0
        %1099 = vmatmul.mubr.f32.gmra.mrb[0].mxu0 %v1017
        %v1100 = vpop.f32.mrb[0].mxu0
        %v1101 = vadd.f32 %v343, %v1100
        %v1102 = vpop.f32.mrb[0].mxu0
        %1103 = vdwg.mxu0
        %s1104 = scalar_lea.vmem %s327, 192 [#allocation3]
        %1105 = vst [vmem:[%s1104] sm:$0xff] %v1086
        %1106 = vst [vmem:[%s1104 + $0x8] sm:$0xff] %v1091
        %1107 = vst [vmem:[%s1104 + $0x10] sm:$0xff] %v1096
        %1108 = vst [vmem:[%s1104 + $0x18] sm:$0xff] %v1101
        %v1109 = vmax.f32 %v998, %v1086
        %v1110 = vmax.f32 %v999, %v1091
        %v1111 = vmax.f32 %v1000, %v1096
        %v1112 = vmax.f32 %v1001, %v1101
        %s1113 = scalar_lea.vmem %s307, 224 [#allocation2]
        %v1114 = vld [vmem:[%s1113] sm:$0xff]
        %v1115 = vld [vmem:[%s1113 + $0x8] sm:$0xff]
        %v1116 = vld [vmem:[%s1113 + $0x10] sm:$0xff]
        %v1117 = vld [vmem:[%s1113 + $0x18] sm:$0xff]
        %v1119 = vsel %vm345, %v1114, 0
        %v1122 = vsel %vm345, %v1115, 0
        %v1125 = vsel %vm345, %v1116, 0
        %v1128 = vsel %vm345, %v1117, 0
        %1130 = vmatprep.subr.mxu0 0.0
        %1131 = vmatpush1.msra.mxu0 %v330
        %1132 = vmatprep.subr.mxu0 0.0
        %1133 = vmatpush1.msra.mxu0 %v331
        %1134 = vmatprep.subr.mxu0 0.0
        %1135 = vmatpush1.msra.mxu0 %v332
        %1136 = vmatprep.subr.mxu0 0.0
        %1137 = vmatpush1.msra.mxu0 %v333
        %1138 = vmatprep.subr.mxu0 0.0
        %1139 = vmatpush1.msra.mxu0 0.0
        %1140 = vmatprep.subr.mxu0 0.0
        %1141 = vmatpush1.msra.mxu0 0.0
        %1142 = vmatprep.subr.mxu0 0.0
        %1143 = vmatpush1.msra.mxu0 0.0
        %1144 = vmatprep.subr.mxu0 0.0
        %1145 = vmatpush1.msra.mxu0 0.0
        %1146 = vmatprep.subr.mxu0 0.0
        %1147 = vmatpush1.msra.mxu0 0.0
        %1148 = vmatprep.subr.mxu0 0.0
        %1149 = vmatpush1.msra.mxu0 0.0
        %1150 = vmatprep.subr.mxu0 0.0
        %1151 = vmatpush1.msra.mxu0 0.0
        %1152 = vmatprep.subr.mxu0 0.0
        %1153 = vmatpush1.msra.mxu0 0.0
        %1154 = vmatprep.subr.mxu0 0.0
        %1155 = vmatpush1.msra.mxu0 0.0
        %1156 = vmatprep.subr.mxu0 0.0
        %1157 = vmatpush1.msra.mxu0 0.0
        %1158 = vmatprep.subr.mxu0 0.0
        %1159 = vmatpush1.msra.mxu0 0.0
        %1160 = vmatprep.subr.mxu0 0.0
        %1161 = vmatpush1.msra.mxu0 0.0
        %1162 = vmatprep.subr.mxu0 0.0
        %1163 = vmatpush1.msra.mxu0 0.0
        %1164 = vmatprep.subr.mxu0 0.0
        %1165 = vmatpush1.msra.mxu0 0.0
        %1166 = vmatprep.subr.mxu0 0.0
        %1167 = vmatpush1.msra.mxu0 0.0
        %1168 = vmatprep.subr.mxu0 0.0
        %1169 = vmatpush1.msra.mxu0 0.0
        %1170 = vmatprep.subr.mxu0 0.0
        %1171 = vmatpush1.msra.mxu0 0.0
        %1172 = vmatprep.subr.mxu0 0.0
        %1173 = vmatpush1.msra.mxu0 0.0
        %1174 = vmatprep.subr.mxu0 0.0
        %1175 = vmatpush1.msra.mxu0 0.0
        %1176 = vmatprep.subr.mxu0 0.0
        %1177 = vmatpush1.msra.mxu0 0.0
        %1178 = vmatprep.subr.mxu0 0.0
        %1179 = vmatpush1.msra.mxu0 0.0
        %1180 = vmatprep.subr.mxu0 0.0
        %1181 = vmatpush1.msra.mxu0 0.0
        %1182 = vmatprep.subr.mxu0 0.0
        %1183 = vmatpush1.msra.mxu0 0.0
        %1184 = vmatprep.subr.mxu0 0.0
        %1185 = vmatpush1.msra.mxu0 0.0
        %1186 = vmatprep.subr.mxu0 0.0
        %1187 = vmatpush1.msra.mxu0 0.0
        %1188 = vmatprep.subr.mxu0 0.0
        %1189 = vmatpush1.msra.mxu0 0.0
        %1190 = vmatprep.subr.mxu0 0.0
        %1191 = vmatpush1.msra.mxu0 0.0
        %1192 = vmatprep.subr.mxu0 0.0
        %1193 = vmatpush1.msra.mxu0 0.0
        %1194 = vmatprep.mubr.f32.mxu0 0.0
        %1195 = vmatmul.mubr.f32.gmra.mrb[0].mxu0 %v1119
        %v1196 = vpop.f32.mrb[0].mxu0
        %v1197 = vadd.f32 %v343, %v1196
        %v1198 = vpop.f32.mrb[0].mxu0
        %1199 = vmatprep.mubr.f32.mxu0 0.0
        %1200 = vmatmul.mubr.f32.gmra.mrb[0].mxu0 %v1122
        %v1201 = vpop.f32.mrb[0].mxu0
        %v1202 = vadd.f32 %v343, %v1201
        %v1203 = vpop.f32.mrb[0].mxu0
        %1204 = vmatprep.mubr.f32.mxu0 0.0
        %1205 = vmatmul.mubr.f32.gmra.mrb[0].mxu0 %v1125
        %v1206 = vpop.f32.mrb[0].mxu0
        %v1207 = vadd.f32 %v343, %v1206
        %v1208 = vpop.f32.mrb[0].mxu0
        %1209 = vmatprep.mubr.f32.mxu0 0.0
        %1210 = vmatmul.mubr.f32.gmra.mrb[0].mxu0 %v1128
        %v1211 = vpop.f32.mrb[0].mxu0
        %v1212 = vadd.f32 %v343, %v1211
        %v1213 = vpop.f32.mrb[0].mxu0
        %1214 = vdwg.mxu0
        %s1215 = scalar_lea.vmem %s327, 224 [#allocation3]
        %1216 = vst [vmem:[%s1215] sm:$0xff] %v1197
        %1217 = vst [vmem:[%s1215 + $0x8] sm:$0xff] %v1202
        %1218 = vst [vmem:[%s1215 + $0x10] sm:$0xff] %v1207
        %1219 = vst [vmem:[%s1215 + $0x18] sm:$0xff] %v1212
        %v1220 = vmax.f32 %v1109, %v1197
        %v1221 = vmax.f32 %v1110, %v1202
        %v1222 = vmax.f32 %v1111, %v1207
        %v1223 = vmax.f32 %v1112, %v1212
        %v1224 = vld [vmem:[%s327] sm:$0xff]
        %v1225 = vld [vmem:[%s327 + $0x8] sm:$0xff]
        %v1226 = vld [vmem:[%s327 + $0x10] sm:$0xff]
        %v1227 = vld [vmem:[%s327 + $0x18] sm:$0xff]
        %v1228 = vsub.f32 %v1224, %v1220
        %v1229 = vsub.f32 %v1225, %v1221
        %v1230 = vsub.f32 %v1226, %v1222
        %v1231 = vsub.f32 %v1227, %v1223
        %v1232 = vmul.f32 %v1228, 1.442695
        %v1233 = vpow.pop %v1232
        %v1234 = vmul.f32 %v1229, 1.442695
        %v1235 = vpow.pop %v1234
        %v1236 = vmul.f32 %v1230, 1.442695
        %v1237 = vpow.pop %v1236
        %v1238 = vmul.f32 %v1231, 1.442695
        %v1239 = vpow.pop %v1238
        %v1240 = vadd.f32 %v1233, 0.0
        %v1241 = vadd.f32 %v1235, 0.0
        %v1242 = vadd.f32 %v1237, 0.0
        %v1243 = vadd.f32 %v1239, 0.0
        %v1244 = vld [vmem:[%s549] sm:$0xff]
        %v1245 = vld [vmem:[%s549 + $0x8] sm:$0xff]
        %v1246 = vld [vmem:[%s549 + $0x10] sm:$0xff]
        %v1247 = vld [vmem:[%s549 + $0x18] sm:$0xff]
        %v1248 = vsub.f32 %v1244, %v1220
        %v1249 = vsub.f32 %v1245, %v1221
        %v1250 = vsub.f32 %v1246, %v1222
        %v1251 = vsub.f32 %v1247, %v1223
        %v1252 = vmul.f32 %v1248, 1.442695
        %v1253 = vpow.pop %v1252
        %v1254 = vmul.f32 %v1249, 1.442695
        %v1255 = vpow.pop %v1254
        %v1256 = vmul.f32 %v1250, 1.442695
        %v1257 = vpow.pop %v1256
        %v1258 = vmul.f32 %v1251, 1.442695
        %v1259 = vpow.pop %v1258
        %v1260 = vadd.f32 %v1240, %v1253
        %v1261 = vadd.f32 %v1241, %v1255
        %v1262 = vadd.f32 %v1242, %v1257
        %v1263 = vadd.f32 %v1243, %v1259
        %v1264 = vld [vmem:[%s660] sm:$0xff]
        %v1265 = vld [vmem:[%s660 + $0x8] sm:$0xff]
        %v1266 = vld [vmem:[%s660 + $0x10] sm:$0xff]
        %v1267 = vld [vmem:[%s660 + $0x18] sm:$0xff]
        %v1268 = vsub.f32 %v1264, %v1220
        %v1269 = vsub.f32 %v1265, %v1221
        %v1270 = vsub.f32 %v1266, %v1222
        %v1271 = vsub.f32 %v1267, %v1223
        %v1272 = vmul.f32 %v1268, 1.442695
        %v1273 = vpow.pop %v1272
        %v1274 = vmul.f32 %v1269, 1.442695
        %v1275 = vpow.pop %v1274
        %v1276 = vmul.f32 %v1270, 1.442695
        %v1277 = vpow.pop %v1276
        %v1278 = vmul.f32 %v1271, 1.442695
        %v1279 = vpow.pop %v1278
        %v1280 = vadd.f32 %v1260, %v1273
        %v1281 = vadd.f32 %v1261, %v1275
        %v1282 = vadd.f32 %v1262, %v1277
        %v1283 = vadd.f32 %v1263, %v1279
        %v1284 = vld [vmem:[%s771] sm:$0xff]
        %v1285 = vld [vmem:[%s771 + $0x8] sm:$0xff]
        %v1286 = vld [vmem:[%s771 + $0x10] sm:$0xff]
        %v1287 = vld [vmem:[%s771 + $0x18] sm:$0xff]
        %v1288 = vsub.f32 %v1284, %v1220
        %v1289 = vsub.f32 %v1285, %v1221
        %v1290 = vsub.f32 %v1286, %v1222
        %v1291 = vsub.f32 %v1287, %v1223
        %v1292 = vmul.f32 %v1288, 1.442695
        %v1293 = vpow.pop %v1292
        %v1294 = vmul.f32 %v1289, 1.442695
        %v1295 = vpow.pop %v1294
        %v1296 = vmul.f32 %v1290, 1.442695
        %v1297 = vpow.pop %v1296
        %v1298 = vmul.f32 %v1291, 1.442695
        %v1299 = vpow.pop %v1298
        %v1300 = vadd.f32 %v1280, %v1293
        %v1301 = vadd.f32 %v1281, %v1295
        %v1302 = vadd.f32 %v1282, %v1297
        %v1303 = vadd.f32 %v1283, %v1299
        %v1304 = vld [vmem:[%s882] sm:$0xff]
        %v1305 = vld [vmem:[%s882 + $0x8] sm:$0xff]
        %v1306 = vld [vmem:[%s882 + $0x10] sm:$0xff]
        %v1307 = vld [vmem:[%s882 + $0x18] sm:$0xff]
        %v1308 = vsub.f32 %v1304, %v1220
        %v1309 = vsub.f32 %v1305, %v1221
        %v1310 = vsub.f32 %v1306, %v1222
        %v1311 = vsub.f32 %v1307, %v1223
        %v1312 = vmul.f32 %v1308, 1.442695
        %v1313 = vpow.pop %v1312
        %v1314 = vmul.f32 %v1309, 1.442695
        %v1315 = vpow.pop %v1314
        %v1316 = vmul.f32 %v1310, 1.442695
        %v1317 = vpow.pop %v1316
        %v1318 = vmul.f32 %v1311, 1.442695
        %v1319 = vpow.pop %v1318
        %v1320 = vadd.f32 %v1300, %v1313
        %v1321 = vadd.f32 %v1301, %v1315
        %v1322 = vadd.f32 %v1302, %v1317
        %v1323 = vadd.f32 %v1303, %v1319
        %v1324 = vld [vmem:[%s993] sm:$0xff]
        %v1325 = vld [vmem:[%s993 + $0x8] sm:$0xff]
        %v1326 = vld [vmem:[%s993 + $0x10] sm:$0xff]
        %v1327 = vld [vmem:[%s993 + $0x18] sm:$0xff]
        %v1328 = vsub.f32 %v1324, %v1220
        %v1329 = vsub.f32 %v1325, %v1221
        %v1330 = vsub.f32 %v1326, %v1222
        %v1331 = vsub.f32 %v1327, %v1223
        %v1332 = vmul.f32 %v1328, 1.442695
        %v1333 = vpow.pop %v1332
        %v1334 = vmul.f32 %v1329, 1.442695
        %v1335 = vpow.pop %v1334
        %v1336 = vmul.f32 %v1330, 1.442695
        %v1337 = vpow.pop %v1336
        %v1338 = vmul.f32 %v1331, 1.442695
        %v1339 = vpow.pop %v1338
        %v1340 = vadd.f32 %v1320, %v1333
        %v1341 = vadd.f32 %v1321, %v1335
        %v1342 = vadd.f32 %v1322, %v1337
        %v1343 = vadd.f32 %v1323, %v1339
        %v1344 = vld [vmem:[%s1104] sm:$0xff]
        %v1345 = vld [vmem:[%s1104 + $0x8] sm:$0xff]
        %v1346 = vld [vmem:[%s1104 + $0x10] sm:$0xff]
        %v1347 = vld [vmem:[%s1104 + $0x18] sm:$0xff]
        %v1348 = vsub.f32 %v1344, %v1220
        %v1349 = vsub.f32 %v1345, %v1221
        %v1350 = vsub.f32 %v1346, %v1222
        %v1351 = vsub.f32 %v1347, %v1223
        %v1352 = vmul.f32 %v1348, 1.442695
        %v1353 = vpow.pop %v1352
        %v1354 = vmul.f32 %v1349, 1.442695
        %v1355 = vpow.pop %v1354
        %v1356 = vmul.f32 %v1350, 1.442695
        %v1357 = vpow.pop %v1356
        %v1358 = vmul.f32 %v1351, 1.442695
        %v1359 = vpow.pop %v1358
        %v1360 = vadd.f32 %v1340, %v1353
        %v1361 = vadd.f32 %v1341, %v1355
        %v1362 = vadd.f32 %v1342, %v1357
        %v1363 = vadd.f32 %v1343, %v1359
        %v1364 = vld [vmem:[%s1215] sm:$0xff]
        %v1365 = vld [vmem:[%s1215 + $0x8] sm:$0xff]
        %v1366 = vld [vmem:[%s1215 + $0x10] sm:$0xff]
        %v1367 = vld [vmem:[%s1215 + $0x18] sm:$0xff]
        %v1368 = vsub.f32 %v1364, %v1220
        %v1369 = vsub.f32 %v1365, %v1221
        %v1370 = vsub.f32 %v1366, %v1222
        %v1371 = vsub.f32 %v1367, %v1223
        %v1372 = vmul.f32 %v1368, 1.442695
        %v1373 = vpow.pop %v1372
        %v1374 = vmul.f32 %v1369, 1.442695
        %v1375 = vpow.pop %v1374
        %v1376 = vmul.f32 %v1370, 1.442695
        %v1377 = vpow.pop %v1376
        %v1378 = vmul.f32 %v1371, 1.442695
        %v1379 = vpow.pop %v1378
        %v1380 = vadd.f32 %v1360, %v1373
        %v1381 = vadd.f32 %v1361, %v1375
        %v1382 = vadd.f32 %v1362, %v1377
        %v1383 = vadd.f32 %v1363, %v1379
        %v1384 = vlog2.pop %v1380
        %v1385 = vmul.f32 %v1384, 0.6931472
        %v1386 = vlog2.pop %v1381
        %v1387 = vmul.f32 %v1386, 0.6931472
        %v1388 = vlog2.pop %v1382
        %v1389 = vmul.f32 %v1388, 0.6931472
        %v1390 = vlog2.pop %v1383
        %v1391 = vmul.f32 %v1390, 0.6931472
        %v1392 = vadd.f32 %v1220, %v1385
        %v1393 = vadd.f32 %v1221, %v1387
        %v1394 = vadd.f32 %v1222, %v1389
        %v1395 = vadd.f32 %v1223, %v1391
        %v1396 = vsub.f32 %v1224, %v1392
        %v1397 = vsub.f32 %v1225, %v1393
        %v1398 = vsub.f32 %v1226, %v1394
        %v1399 = vsub.f32 %v1227, %v1395
        %1400 = vst [vmem:[%s327] sm:$0xff] %v1396
        %1401 = vst [vmem:[%s327 + $0x8] sm:$0xff] %v1397
        %1402 = vst [vmem:[%s327 + $0x10] sm:$0xff] %v1398
        %1403 = vst [vmem:[%s327 + $0x18] sm:$0xff] %v1399
        %v1404 = vld [vmem:[%s549] sm:$0xff]
        %v1405 = vld [vmem:[%s549 + $0x8] sm:$0xff]
        %v1406 = vld [vmem:[%s549 + $0x10] sm:$0xff]
        %v1407 = vld [vmem:[%s549 + $0x18] sm:$0xff]
        %v1408 = vsub.f32 %v1404, %v1392
        %v1409 = vsub.f32 %v1405, %v1393
        %v1410 = vsub.f32 %v1406, %v1394
        %v1411 = vsub.f32 %v1407, %v1395
        %1412 = vst [vmem:[%s549] sm:$0xff] %v1408
        %1413 = vst [vmem:[%s549 + $0x8] sm:$0xff] %v1409
        %1414 = vst [vmem:[%s549 + $0x10] sm:$0xff] %v1410
        %1415 = vst [vmem:[%s549 + $0x18] sm:$0xff] %v1411
        %v1416 = vld [vmem:[%s660] sm:$0xff]
        %v1417 = vld [vmem:[%s660 + $0x8] sm:$0xff]
        %v1418 = vld [vmem:[%s660 + $0x10] sm:$0xff]
        %v1419 = vld [vmem:[%s660 + $0x18] sm:$0xff]
        %v1420 = vsub.f32 %v1416, %v1392
        %v1421 = vsub.f32 %v1417, %v1393
        %v1422 = vsub.f32 %v1418, %v1394
        %v1423 = vsub.f32 %v1419, %v1395
        %1424 = vst [vmem:[%s660] sm:$0xff] %v1420
        %1425 = vst [vmem:[%s660 + $0x8] sm:$0xff] %v1421
        %1426 = vst [vmem:[%s660 + $0x10] sm:$0xff] %v1422
        %1427 = vst [vmem:[%s660 + $0x18] sm:$0xff] %v1423
        %v1428 = vld [vmem:[%s771] sm:$0xff]
        %v1429 = vld [vmem:[%s771 + $0x8] sm:$0xff]
        %v1430 = vld [vmem:[%s771 + $0x10] sm:$0xff]
        %v1431 = vld [vmem:[%s771 + $0x18] sm:$0xff]
        %v1432 = vsub.f32 %v1428, %v1392
        %v1433 = vsub.f32 %v1429, %v1393
        %v1434 = vsub.f32 %v1430, %v1394
        %v1435 = vsub.f32 %v1431, %v1395
        %1436 = vst [vmem:[%s771] sm:$0xff] %v1432
        %1437 = vst [vmem:[%s771 + $0x8] sm:$0xff] %v1433
        %1438 = vst [vmem:[%s771 + $0x10] sm:$0xff] %v1434
        %1439 = vst [vmem:[%s771 + $0x18] sm:$0xff] %v1435
        %v1440 = vld [vmem:[%s882] sm:$0xff]
        %v1441 = vld [vmem:[%s882 + $0x8] sm:$0xff]
        %v1442 = vld [vmem:[%s882 + $0x10] sm:$0xff]
        %v1443 = vld [vmem:[%s882 + $0x18] sm:$0xff]
        %v1444 = vsub.f32 %v1440, %v1392
        %v1445 = vsub.f32 %v1441, %v1393
        %v1446 = vsub.f32 %v1442, %v1394
        %v1447 = vsub.f32 %v1443, %v1395
        %1448 = vst [vmem:[%s882] sm:$0xff] %v1444
        %1449 = vst [vmem:[%s882 + $0x8] sm:$0xff] %v1445
        %1450 = vst [vmem:[%s882 + $0x10] sm:$0xff] %v1446
        %1451 = vst [vmem:[%s882 + $0x18] sm:$0xff] %v1447
        %v1452 = vld [vmem:[%s993] sm:$0xff]
        %v1453 = vld [vmem:[%s993 + $0x8] sm:$0xff]
        %v1454 = vld [vmem:[%s993 + $0x10] sm:$0xff]
        %v1455 = vld [vmem:[%s993 + $0x18] sm:$0xff]
        %v1456 = vsub.f32 %v1452, %v1392
        %v1457 = vsub.f32 %v1453, %v1393
        %v1458 = vsub.f32 %v1454, %v1394
        %v1459 = vsub.f32 %v1455, %v1395
        %1460 = vst [vmem:[%s993] sm:$0xff] %v1456
        %1461 = vst [vmem:[%s993 + $0x8] sm:$0xff] %v1457
        %1462 = vst [vmem:[%s993 + $0x10] sm:$0xff] %v1458
        %1463 = vst [vmem:[%s993 + $0x18] sm:$0xff] %v1459
        %v1464 = vld [vmem:[%s1104] sm:$0xff]
        %v1465 = vld [vmem:[%s1104 + $0x8] sm:$0xff]
        %v1466 = vld [vmem:[%s1104 + $0x10] sm:$0xff]
        %v1467 = vld [vmem:[%s1104 + $0x18] sm:$0xff]
        %v1468 = vsub.f32 %v1464, %v1392
        %v1469 = vsub.f32 %v1465, %v1393
        %v1470 = vsub.f32 %v1466, %v1394
        %v1471 = vsub.f32 %v1467, %v1395
        %1472 = vst [vmem:[%s1104] sm:$0xff] %v1468
        %1473 = vst [vmem:[%s1104 + $0x8] sm:$0xff] %v1469
        %1474 = vst [vmem:[%s1104 + $0x10] sm:$0xff] %v1470
        %1475 = vst [vmem:[%s1104 + $0x18] sm:$0xff] %v1471
        %v1476 = vld [vmem:[%s1215] sm:$0xff]
        %v1477 = vld [vmem:[%s1215 + $0x8] sm:$0xff]
        %v1478 = vld [vmem:[%s1215 + $0x10] sm:$0xff]
        %v1479 = vld [vmem:[%s1215 + $0x18] sm:$0xff]
        %v1480 = vsub.f32 %v1476, %v1392
        %v1481 = vsub.f32 %v1477, %v1393
        %v1482 = vsub.f32 %v1478, %v1394
        %v1483 = vsub.f32 %v1479, %v1395
        %1484 = vst [vmem:[%s1215] sm:$0xff] %v1480
        %1485 = vst [vmem:[%s1215 + $0x8] sm:$0xff] %v1481
        %1486 = vst [vmem:[%s1215 + $0x10] sm:$0xff] %v1482
        %1487 = vst [vmem:[%s1215 + $0x18] sm:$0xff] %v1483
        %s1488 = sand.u32 %s93, 1
        %s1489 = scalar_lea.sflag [#allocation4], %s1488
        %s1490 = sand.u32 %s93, 1
        %s1491 = smul.addr %s1490, 256
        %s1492 = scalar_lea.vmem [#allocation3], %s1491
        // Predicated region
        $region71: #{tpu_custom_call.1} parent=65 // pred_check
          %p1493 = pneg %p103
        $region72: #{tpu_custom_call.1} parent=65 // pred_check_branch
          %1495 = sbr.rel (%p1493) target = $region74
        $region73: #{tpu_custom_call.1} parent=65 // pred_region
          #allocation6 [shape = 'u32[6]{0}', space=smem, size = 0x18, scoped, tag = 'DMA stride descriptor']
          %s1496 = smul.u32 4, %s17
          %s1498 = ssub.s32 4096, 4096
          %1499 = vsyncadd %s1489, %s1498
          %s1500 = smul.addr %s1496, 128
          %s1501 = scalar_lea.hbm %s3, %s1500
          %s1503 = sshll.u32 1, 14
          %s1504 = sxor.u32 4294967295, %s1503
          %s1507 = sshll.u32 7, 18
          %s1508 = sxor.u32 4294967295, %s1507
          %s1509 = sand.u32 0, %s1508
          %s1511 = sor.u32 %s1509, 0
          %s1513 = sshll.u32 3, 24
          %s1514 = sxor.u32 4294967295, %s1513
          %s1515 = sand.u32 %s1511, %s1514
          %s1517 = sor.u32 %s1515, 0
          %s1518 = sshll.u32 %s1492, 4
          %s1519 = int_to_ptr.vmem [resolvable:$true] %s1518
          %1525 = sst [smem:[#allocation6]] 512
          %s1526 = scalar_lea.smem [#allocation6], 1
          %1527 = sst [smem:[%s1526]] 2048
          %s1528 = scalar_lea.smem [#allocation6], 2
          %1529 = sst [smem:[%s1528]] 4
          %s1530 = scalar_lea.smem [#allocation6], 3
          %1531 = sst [smem:[%s1530]] 128
          %s1532 = scalar_lea.smem [#allocation6], 4
          %1533 = sst [smem:[%s1532]] 128
          %s1534 = scalar_lea.smem [#allocation6], 5
          %1535 = sst [smem:[%s1534]] 8
          %1537 = dma.general %s1519, 4096, %s1501, %s1489, [#allocation5], [#allocation6], %s1517, 0
        $region74: #{tpu_custom_call.1} parent=65 // pred_fallthru
          _
      $region66: #{tpu_custom_call.1} parent=5 // pred_fallthru
        _
      %p1538 = scmp.le.s32.totalorder 2, %s12
      // Predicated region
      $region75: #{tpu_custom_call.1} parent=5 // pred_check
        %p1539 = pneg %p1538
      $region76: #{tpu_custom_call.1} parent=5 // pred_check_branch
        %1541 = sbr.rel (%p1539) target = $region78
      $region77: #{tpu_custom_call.1} parent=5 // pred_region
        %s1542 = ssub.s32 %s12, 2
        // Predicated region
        $region79: #{tpu_custom_call.1} parent=77 // pred_check
          %p1543 = pneg %p109
        $region80: #{tpu_custom_call.1} parent=77 // pred_check_branch
          %1545 = sbr.rel (%p1543) target = $region82
        $region81: #{tpu_custom_call.1} parent=77 // pred_region
          %s1546 = sand.u32 %s94, 1
          %s1547 = scalar_lea.sflag [#allocation4], %s1546
          %s1548 = sand.u32 %s94, 1
          %s1549 = smul.addr %s1548, 256
          %s1550 = scalar_lea.vmem [#allocation3], %s1549
          %1551 = dma.done %s1547, 4096
        $region82: #{tpu_custom_call.1} parent=77 // pred_fallthru
          _
      $region78: #{tpu_custom_call.1} parent=5 // pred_fallthru
        _
    $region6: #{tpu_custom_call.1} parent=1 // loop_footer
      %s16 = sadd.s32 1, %s12
    $region7: #{tpu_custom_call.1} parent=1 // loop_footer_branch
      %11 = sbr.rel target = $region3
    $region8: #{tpu_custom_call.1} parent=1 // loop_exit
      _
    %1552 = vsyncpa [#allocation4], 1
    %s1553 = scalar_lea.sflag [#allocation4], 1
    %1554 = vsyncpa %s1553, 1

</llo_original>
